<compile_context>
chip_gen: v7x
topology: tpu7x:2x2x1
jax: 0.10.0
libtpu: 0.0.40
codegen_flags: <defaults>
</compile_context>

<pallas_src>
import functools

import numpy as np

import jax
import jax.numpy as jnp
from jax import lax
from jax.experimental import pallas as pl
from jax.experimental.pallas import tpu as pltpu


def _sa_kernel(w_ref, m_ref, x_ref, o_ref, pad_ref, *, C, H, W, K, P):
    # w_ref  : (2*K*K,)            SMEM  flattened conv weight (out=1, in=2, K, K)
    # m_ref  : (K, H*W)            VMEM  column-validity masks (one per kernel col)
    # x_ref  : (B, C, H*W)         VMEM  input batch tile (lane-dense)
    # o_ref  : (B, H*W)            VMEM  output batch tile (lane-dense)
    # pad_ref: (2, B, H*W + 2*PAD) VMEM  flat zero-padded [avg; max] planes
    B = x_ref.shape[0]
    HW = H * W
    PAD = P * W + P  # flat left/right zero pad covering P rows + P columns

    # --- channel reductions (mean & max over C), one aligned load per channel ---
    x0 = x_ref[:, 0, :].astype(jnp.float32)        # (B, HW)
    ssum = x0
    smax = x0
    for c in range(1, C):
        xc = x_ref[:, c, :].astype(jnp.float32)
        ssum = ssum + xc
        smax = jnp.maximum(smax, xc)
    avg = ssum * (1.0 / C)

    # --- write the two planes into the flat zero-padded scratch ---
    # Re-zero only the small borders every step (interior is fully overwritten).
    zb = jnp.zeros((B, PAD), jnp.float32)
    pad_ref[0, :, 0:PAD] = zb
    pad_ref[0, :, PAD + HW:PAD + HW + PAD] = zb
    pad_ref[1, :, 0:PAD] = zb
    pad_ref[1, :, PAD + HW:PAD + HW + PAD] = zb
    pad_ref[0, :, PAD:PAD + HW] = avg
    pad_ref[1, :, PAD:PAD + HW] = smax

    # --- load each padded plane ONCE; conv taps become in-register lane shifts ---
    ap = pad_ref[0]                                # (B, HW + 2*PAD)
    mp = pad_ref[1]
    cmask = m_ref[...]                             # (K, HW)

    # Hoist all 2*K*K scalar weights out of the FMA stream.
    wa = [[w_ref[(0 * K + dy) * K + dx] for dx in range(K)] for dy in range(K)]
    wm = [[w_ref[(1 * K + dy) * K + dx] for dx in range(K)] for dy in range(K)]

    acc = jnp.zeros((B, HW), jnp.float32)
    for dx in range(K):
        col_acc = jnp.zeros((B, HW), jnp.float32)
        for dy in range(K):
            off = dy * W + dx                      # window start inside padded plane
            col_acc = col_acc + wa[dy][dx] * ap[:, off:off + HW]
            col_acc = col_acc + wm[dy][dx] * mp[:, off:off + HW]
        # Mask out taps whose source column fell outside [0, W) (row wrap).
        acc = acc + col_acc * cmask[dx:dx + 1, :]

    o_ref[...] = jax.nn.sigmoid(acc).astype(o_ref.dtype)


def _pick_batch_tile(n, per_sample_bytes):
    # Target ~1-2 MiB input tiles (Pallas DMA sweet spot); the pipeline
    # double-buffers them. Keep the (b_tile, H*W) output block's sublane dim
    # compliant: a multiple of 8, or the full batch.
    target = 2 << 20
    if n * per_sample_bytes <= target:
        return n
    cand = max(1, target // max(per_sample_bytes, 1))
    cand = min(cand, max(1, n // 2))   # >= 2 grid steps so v7x can use both TCs
    cand = max(8, (cand // 8) * 8)
    return min(cand, n)


def spatial_attention_msa(x, weight, *, kernel_size=7):
    """x: (N, C, H, W); weight: (1, 2, K, K). Returns (N, 1, H, W)."""
    assert kernel_size in (3, 5, 7)
    N, C, H, W = x.shape
    K = kernel_size
    P = K // 2  # 3 for k=7, 2 for k=5, 1 for k=3 — matches the module's padding
    HW = H * W
    PAD = P * W + P
    FLATP = HW + 2 * PAD

    # Lane-dense views: collapse spatial dims (free reshape of contiguous HBM).
    x_flat = x.reshape(N, C, HW)
    w_flat = weight.reshape(-1).astype(jnp.float32)          # (2*K*K,)

    # Static column-validity masks: output column w may use source column
    # w + dx - P only if it stays inside [0, W).
    col = np.arange(HW, dtype=np.int64) % W
    masks_np = np.stack(
        [((col + dx - P >= 0) & (col + dx - P < W)) for dx in range(K)], axis=0)
    masks = jnp.asarray(masks_np.astype(np.float32))         # (K, HW)

    b_tile = _pick_batch_tile(N, C * HW * x.dtype.itemsize)
    grid = (pl.cdiv(N, b_tile),)

    kernel = functools.partial(_sa_kernel, C=C, H=H, W=W, K=K, P=P)

    out_flat = pl.pallas_call(
        kernel,
        out_shape=jax.ShapeDtypeStruct((N, HW), x.dtype),
        grid_spec=pltpu.PrefetchScalarGridSpec(
            num_scalar_prefetch=0,
            grid=grid,
            in_specs=[
                pl.BlockSpec(memory_space=pltpu.MemorySpace.SMEM),    # weights
                pl.BlockSpec((K, HW), lambda b: (0, 0)),              # col masks (resident)
                pl.BlockSpec((b_tile, C, HW), lambda b: (b, 0, 0)),   # input batch tile
            ],
            out_specs=pl.BlockSpec((b_tile, HW), lambda b: (b, 0)),
            scratch_shapes=[pltpu.VMEM((2, b_tile, FLATP), jnp.float32)],
        ),
        compiler_params=pltpu.CompilerParams(
            dimension_semantics=("parallel",)),
    )(w_flat, masks, x_flat)

    return out_flat.reshape(N, 1, H, W)


def _reference(x, weight, *, kernel_size=7):
    """Pure-JAX reference matching the PyTorch forward."""
    P = kernel_size // 2
    avg = jnp.mean(x, axis=1, keepdims=True)
    mx = jnp.max(x, axis=1, keepdims=True)
    cat = jnp.concatenate([avg, mx], axis=1)                  # (N, 2, H, W)
    y = lax.conv_general_dilated(
        cat, weight, window_strides=(1, 1), padding=((P, P), (P, P)),
        dimension_numbers=("NCHW", "OIHW", "NCHW"))
    return jax.nn.sigmoid(y)


if __name__ == "__main__":
    key = jax.random.PRNGKey(0)
    kx, kw = jax.random.split(key)

    N, C, H, W = 2, 4, 16, 16
    K = 7

    x = jax.random.normal(kx, (N, C, H, W), dtype=jnp.float32)

    # Deterministic Conv2d(2, 1, 7, bias=False) weight init
    # (kaiming-uniform-like bound = 1/sqrt(fan_in) = 1/sqrt(2*K*K)).
    bound = 1.0 / jnp.sqrt(2.0 * K * K)
    weight = jax.random.uniform(kw, (1, 2, K, K), dtype=jnp.float32,
                                minval=-bound, maxval=bound)

    out = spatial_attention_msa(x, weight, kernel_size=K)
    out = jax.block_until_ready(out)

    ref = jax.block_until_ready(_reference(x, weight, kernel_size=K))
    assert out.shape == (N, 1, H, W)
    err = jnp.max(jnp.abs(out - ref))
    assert jnp.allclose(out, ref, atol=1e-5, rtol=1e-5), f"max abs err = {err}"

    print("KERNEL_OK")
</pallas_src>

<mosaic_0001>
module attributes {stable_mosaic.version = 11 : i64} {
  func.func @_sa_kernel(%arg0: i32, %arg1: memref<98xf32, #tpu.memory_space<smem>>, %arg2: memref<7x256xf32, #tpu.memory_space<vmem>>, %arg3: memref<2x4x256xf32, #tpu.memory_space<vmem>>, %arg4: memref<2x256xf32, #tpu.memory_space<vmem>>, %arg5: memref<2x2x358xf32, #tpu.memory_space<vmem>>) attributes {dimension_semantics = [#tpu.dimension_semantics<parallel>], iteration_bounds = array<i64: 1>, scalar_prefetch = 0 : i64, scratch_operands = 1 : i64, tpu.core_type = #tpu.core_type<tc>, window_params = [{transform_indices = @transform_0, window_bounds = array<i64: 98>}, {pipeline_mode = #tpu.pipeline_mode<synchronous>, transform_indices = @transform_1, window_bounds = array<i64: 7, 256>}, {transform_indices = @transform_2, window_bounds = array<i64: 2, 4, 256>}, {transform_indices = @transform_3, window_bounds = array<i64: 2, 256>}]} {
    %c0 = arith.constant 0 : index
    %c0_0 = arith.constant 0 : index
    %c0_1 = arith.constant 0 : index
    %0 = vector.load %arg3[%c0, %c0_0, %c0_1] : memref<2x4x256xf32, #tpu.memory_space<vmem>>, vector<2x1x256xf32>
    %1 = vector.shape_cast %0 : vector<2x1x256xf32> to vector<2x256xf32>
    %c0_2 = arith.constant 0 : index
    %c1 = arith.constant 1 : index
    %c0_3 = arith.constant 0 : index
    %2 = vector.load %arg3[%c0_2, %c1, %c0_3] : memref<2x4x256xf32, #tpu.memory_space<vmem>>, vector<2x1x256xf32>
    %3 = vector.shape_cast %2 : vector<2x1x256xf32> to vector<2x256xf32>
    %4 = arith.addf %1, %3 : vector<2x256xf32>
    %5 = arith.maximumf %1, %3 : vector<2x256xf32>
    %c0_4 = arith.constant 0 : index
    %c2 = arith.constant 2 : index
    %c0_5 = arith.constant 0 : index
    %6 = vector.load %arg3[%c0_4, %c2, %c0_5] : memref<2x4x256xf32, #tpu.memory_space<vmem>>, vector<2x1x256xf32>
    %7 = vector.shape_cast %6 : vector<2x1x256xf32> to vector<2x256xf32>
    %8 = arith.addf %4, %7 : vector<2x256xf32>
    %9 = arith.maximumf %5, %7 : vector<2x256xf32>
    %c0_6 = arith.constant 0 : index
    %c3 = arith.constant 3 : index
    %c0_7 = arith.constant 0 : index
    %10 = vector.load %arg3[%c0_6, %c3, %c0_7] : memref<2x4x256xf32, #tpu.memory_space<vmem>>, vector<2x1x256xf32>
    %11 = vector.shape_cast %10 : vector<2x1x256xf32> to vector<2x256xf32>
    %12 = arith.addf %8, %11 : vector<2x256xf32>
    %13 = arith.maximumf %9, %11 : vector<2x256xf32>
    %cst = arith.constant 2.500000e-01 : f32
    %14 = vector.broadcast %cst : f32 to vector<2x256xf32>
    %15 = arith.mulf %12, %14 : vector<2x256xf32>
    %cst_8 = arith.constant 0.000000e+00 : f32
    %16 = vector.broadcast %cst_8 : f32 to vector<2x51xf32>
    %c0_9 = arith.constant 0 : index
    %c0_10 = arith.constant 0 : index
    %c0_11 = arith.constant 0 : index
    %17 = vector.load %arg5[%c0_9, %c0_10, %c0_11] : memref<2x2x358xf32, #tpu.memory_space<vmem>>, vector<1x2x51xf32>
    %18 = vector.shape_cast %17 : vector<1x2x51xf32> to vector<2x51xf32>
    %19 = vector.shape_cast %16 : vector<2x51xf32> to vector<1x2x51xf32>
    tpu.vector_store %arg5[%c0_9, %c0_10, %c0_11], %19 {strides = array<i32>} : memref<2x2x358xf32, #tpu.memory_space<vmem>>, vector<1x2x51xf32>,
    %c0_12 = arith.constant 0 : index
    %c0_13 = arith.constant 0 : index
    %c307 = arith.constant 307 : index
    %20 = vector.load %arg5[%c0_12, %c0_13, %c307] : memref<2x2x358xf32, #tpu.memory_space<vmem>>, vector<1x2x51xf32>
    %21 = vector.shape_cast %20 : vector<1x2x51xf32> to vector<2x51xf32>
    %22 = vector.shape_cast %16 : vector<2x51xf32> to vector<1x2x51xf32>
    tpu.vector_store %arg5[%c0_12, %c0_13, %c307], %22 {strides = array<i32>} : memref<2x2x358xf32, #tpu.memory_space<vmem>>, vector<1x2x51xf32>,
    %c1_14 = arith.constant 1 : index
    %c0_15 = arith.constant 0 : index
    %c0_16 = arith.constant 0 : index
    %23 = vector.load %arg5[%c1_14, %c0_15, %c0_16] : memref<2x2x358xf32, #tpu.memory_space<vmem>>, vector<1x2x51xf32>
    %24 = vector.shape_cast %23 : vector<1x2x51xf32> to vector<2x51xf32>
    %25 = vector.shape_cast %16 : vector<2x51xf32> to vector<1x2x51xf32>
    tpu.vector_store %arg5[%c1_14, %c0_15, %c0_16], %25 {strides = array<i32>} : memref<2x2x358xf32, #tpu.memory_space<vmem>>, vector<1x2x51xf32>,
    %c1_17 = arith.constant 1 : index
    %c0_18 = arith.constant 0 : index
    %c307_19 = arith.constant 307 : index
    %26 = vector.load %arg5[%c1_17, %c0_18, %c307_19] : memref<2x2x358xf32, #tpu.memory_space<vmem>>, vector<1x2x51xf32>
    %27 = vector.shape_cast %26 : vector<1x2x51xf32> to vector<2x51xf32>
    %28 = vector.shape_cast %16 : vector<2x51xf32> to vector<1x2x51xf32>
    tpu.vector_store %arg5[%c1_17, %c0_18, %c307_19], %28 {strides = array<i32>} : memref<2x2x358xf32, #tpu.memory_space<vmem>>, vector<1x2x51xf32>,
    %c0_20 = arith.constant 0 : index
    %c0_21 = arith.constant 0 : index
    %c51 = arith.constant 51 : index
    %29 = vector.load %arg5[%c0_20, %c0_21, %c51] : memref<2x2x358xf32, #tpu.memory_space<vmem>>, vector<1x2x256xf32>
    %30 = vector.shape_cast %29 : vector<1x2x256xf32> to vector<2x256xf32>
    %31 = vector.shape_cast %15 : vector<2x256xf32> to vector<1x2x256xf32>
    tpu.vector_store %arg5[%c0_20, %c0_21, %c51], %31 {strides = array<i32>} : memref<2x2x358xf32, #tpu.memory_space<vmem>>, vector<1x2x256xf32>,
    %c1_22 = arith.constant 1 : index
    %c0_23 = arith.constant 0 : index
    %c51_24 = arith.constant 51 : index
    %32 = vector.load %arg5[%c1_22, %c0_23, %c51_24] : memref<2x2x358xf32, #tpu.memory_space<vmem>>, vector<1x2x256xf32>
    %33 = vector.shape_cast %32 : vector<1x2x256xf32> to vector<2x256xf32>
    %34 = vector.shape_cast %13 : vector<2x256xf32> to vector<1x2x256xf32>
    tpu.vector_store %arg5[%c1_22, %c0_23, %c51_24], %34 {strides = array<i32>} : memref<2x2x358xf32, #tpu.memory_space<vmem>>, vector<1x2x256xf32>,
    %c0_25 = arith.constant 0 : index
    %c0_26 = arith.constant 0 : index
    %c0_27 = arith.constant 0 : index
    %35 = vector.load %arg5[%c0_25, %c0_26, %c0_27] : memref<2x2x358xf32, #tpu.memory_space<vmem>>, vector<1x2x358xf32>
    %36 = vector.shape_cast %35 : vector<1x2x358xf32> to vector<2x358xf32>
    %c1_28 = arith.constant 1 : index
    %c0_29 = arith.constant 0 : index
    %c0_30 = arith.constant 0 : index
    %37 = vector.load %arg5[%c1_28, %c0_29, %c0_30] : memref<2x2x358xf32, #tpu.memory_space<vmem>>, vector<1x2x358xf32>
    %38 = vector.shape_cast %37 : vector<1x2x358xf32> to vector<2x358xf32>
    %c0_31 = arith.constant 0 : index
    %c0_32 = arith.constant 0 : index
    %39 = vector.load %arg2[%c0_31, %c0_32] : memref<7x256xf32, #tpu.memory_space<vmem>>, vector<7x256xf32>
    %c0_33 = arith.constant 0 : index
    %40 = memref.load %arg1[%c0_33] : memref<98xf32, #tpu.memory_space<smem>>
    %c1_34 = arith.constant 1 : index
    %41 = memref.load %arg1[%c1_34] : memref<98xf32, #tpu.memory_space<smem>>
    %c2_35 = arith.constant 2 : index
    %42 = memref.load %arg1[%c2_35] : memref<98xf32, #tpu.memory_space<smem>>
    %c3_36 = arith.constant 3 : index
    %43 = memref.load %arg1[%c3_36] : memref<98xf32, #tpu.memory_space<smem>>
    %c4 = arith.constant 4 : index
    %44 = memref.load %arg1[%c4] : memref<98xf32, #tpu.memory_space<smem>>
    %c5 = arith.constant 5 : index
    %45 = memref.load %arg1[%c5] : memref<98xf32, #tpu.memory_space<smem>>
    %c6 = arith.constant 6 : index
    %46 = memref.load %arg1[%c6] : memref<98xf32, #tpu.memory_space<smem>>
    %c7 = arith.constant 7 : index
    %47 = memref.load %arg1[%c7] : memref<98xf32, #tpu.memory_space<smem>>
    %c8 = arith.constant 8 : index
    %48 = memref.load %arg1[%c8] : memref<98xf32, #tpu.memory_space<smem>>
    %c9 = arith.constant 9 : index
    %49 = memref.load %arg1[%c9] : memref<98xf32, #tpu.memory_space<smem>>
    %c10 = arith.constant 10 : index
    %50 = memref.load %arg1[%c10] : memref<98xf32, #tpu.memory_space<smem>>
    %c11 = arith.constant 11 : index
    %51 = memref.load %arg1[%c11] : memref<98xf32, #tpu.memory_space<smem>>
    %c12 = arith.constant 12 : index
    %52 = memref.load %arg1[%c12] : memref<98xf32, #tpu.memory_space<smem>>
    %c13 = arith.constant 13 : index
    %53 = memref.load %arg1[%c13] : memref<98xf32, #tpu.memory_space<smem>>
    %c14 = arith.constant 14 : index
    %54 = memref.load %arg1[%c14] : memref<98xf32, #tpu.memory_space<smem>>
    %c15 = arith.constant 15 : index
    %55 = memref.load %arg1[%c15] : memref<98xf32, #tpu.memory_space<smem>>
    %c16 = arith.constant 16 : index
    %56 = memref.load %arg1[%c16] : memref<98xf32, #tpu.memory_space<smem>>
    %c17 = arith.constant 17 : index
    %57 = memref.load %arg1[%c17] : memref<98xf32, #tpu.memory_space<smem>>
    %c18 = arith.constant 18 : index
    %58 = memref.load %arg1[%c18] : memref<98xf32, #tpu.memory_space<smem>>
    %c19 = arith.constant 19 : index
    %59 = memref.load %arg1[%c19] : memref<98xf32, #tpu.memory_space<smem>>
    %c20 = arith.constant 20 : index
    %60 = memref.load %arg1[%c20] : memref<98xf32, #tpu.memory_space<smem>>
    %c21 = arith.constant 21 : index
    %61 = memref.load %arg1[%c21] : memref<98xf32, #tpu.memory_space<smem>>
    %c22 = arith.constant 22 : index
    %62 = memref.load %arg1[%c22] : memref<98xf32, #tpu.memory_space<smem>>
    %c23 = arith.constant 23 : index
    %63 = memref.load %arg1[%c23] : memref<98xf32, #tpu.memory_space<smem>>
    %c24 = arith.constant 24 : index
    %64 = memref.load %arg1[%c24] : memref<98xf32, #tpu.memory_space<smem>>
    %c25 = arith.constant 25 : index
    %65 = memref.load %arg1[%c25] : memref<98xf32, #tpu.memory_space<smem>>
    %c26 = arith.constant 26 : index
    %66 = memref.load %arg1[%c26] : memref<98xf32, #tpu.memory_space<smem>>
    %c27 = arith.constant 27 : index
    %67 = memref.load %arg1[%c27] : memref<98xf32, #tpu.memory_space<smem>>
    %c28 = arith.constant 28 : index
    %68 = memref.load %arg1[%c28] : memref<98xf32, #tpu.memory_space<smem>>
    %c29 = arith.constant 29 : index
    %69 = memref.load %arg1[%c29] : memref<98xf32, #tpu.memory_space<smem>>
    %c30 = arith.constant 30 : index
    %70 = memref.load %arg1[%c30] : memref<98xf32, #tpu.memory_space<smem>>
    %c31 = arith.constant 31 : index
    %71 = memref.load %arg1[%c31] : memref<98xf32, #tpu.memory_space<smem>>
    %c32 = arith.constant 32 : index
    %72 = memref.load %arg1[%c32] : memref<98xf32, #tpu.memory_space<smem>>
    %c33 = arith.constant 33 : index
    %73 = memref.load %arg1[%c33] : memref<98xf32, #tpu.memory_space<smem>>
    %c34 = arith.constant 34 : index
    %74 = memref.load %arg1[%c34] : memref<98xf32, #tpu.memory_space<smem>>
    %c35 = arith.constant 35 : index
    %75 = memref.load %arg1[%c35] : memref<98xf32, #tpu.memory_space<smem>>
    %c36 = arith.constant 36 : index
    %76 = memref.load %arg1[%c36] : memref<98xf32, #tpu.memory_space<smem>>
    %c37 = arith.constant 37 : index
    %77 = memref.load %arg1[%c37] : memref<98xf32, #tpu.memory_space<smem>>
    %c38 = arith.constant 38 : index
    %78 = memref.load %arg1[%c38] : memref<98xf32, #tpu.memory_space<smem>>
    %c39 = arith.constant 39 : index
    %79 = memref.load %arg1[%c39] : memref<98xf32, #tpu.memory_space<smem>>
    %c40 = arith.constant 40 : index
    %80 = memref.load %arg1[%c40] : memref<98xf32, #tpu.memory_space<smem>>
    %c41 = arith.constant 41 : index
    %81 = memref.load %arg1[%c41] : memref<98xf32, #tpu.memory_space<smem>>
    %c42 = arith.constant 42 : index
    %82 = memref.load %arg1[%c42] : memref<98xf32, #tpu.memory_space<smem>>
    %c43 = arith.constant 43 : index
    %83 = memref.load %arg1[%c43] : memref<98xf32, #tpu.memory_space<smem>>
    %c44 = arith.constant 44 : index
    %84 = memref.load %arg1[%c44] : memref<98xf32, #tpu.memory_space<smem>>
    %c45 = arith.constant 45 : index
    %85 = memref.load %arg1[%c45] : memref<98xf32, #tpu.memory_space<smem>>
    %c46 = arith.constant 46 : index
    %86 = memref.load %arg1[%c46] : memref<98xf32, #tpu.memory_space<smem>>
    %c47 = arith.constant 47 : index
    %87 = memref.load %arg1[%c47] : memref<98xf32, #tpu.memory_space<smem>>
    %c48 = arith.constant 48 : index
    %88 = memref.load %arg1[%c48] : memref<98xf32, #tpu.memory_space<smem>>
    %c49 = arith.constant 49 : index
    %89 = memref.load %arg1[%c49] : memref<98xf32, #tpu.memory_space<smem>>
    %c50 = arith.constant 50 : index
    %90 = memref.load %arg1[%c50] : memref<98xf32, #tpu.memory_space<smem>>
    %c51_37 = arith.constant 51 : index
    %91 = memref.load %arg1[%c51_37] : memref<98xf32, #tpu.memory_space<smem>>
    %c52 = arith.constant 52 : index
    %92 = memref.load %arg1[%c52] : memref<98xf32, #tpu.memory_space<smem>>
    %c53 = arith.constant 53 : index
    %93 = memref.load %arg1[%c53] : memref<98xf32, #tpu.memory_space<smem>>
    %c54 = arith.constant 54 : index
    %94 = memref.load %arg1[%c54] : memref<98xf32, #tpu.memory_space<smem>>
    %c55 = arith.constant 55 : index
    %95 = memref.load %arg1[%c55] : memref<98xf32, #tpu.memory_space<smem>>
    %c56 = arith.constant 56 : index
    %96 = memref.load %arg1[%c56] : memref<98xf32, #tpu.memory_space<smem>>
    %c57 = arith.constant 57 : index
    %97 = memref.load %arg1[%c57] : memref<98xf32, #tpu.memory_space<smem>>
    %c58 = arith.constant 58 : index
    %98 = memref.load %arg1[%c58] : memref<98xf32, #tpu.memory_space<smem>>
    %c59 = arith.constant 59 : index
    %99 = memref.load %arg1[%c59] : memref<98xf32, #tpu.memory_space<smem>>
    %c60 = arith.constant 60 : index
    %100 = memref.load %arg1[%c60] : memref<98xf32, #tpu.memory_space<smem>>
    %c61 = arith.constant 61 : index
    %101 = memref.load %arg1[%c61] : memref<98xf32, #tpu.memory_space<smem>>
    %c62 = arith.constant 62 : index
    %102 = memref.load %arg1[%c62] : memref<98xf32, #tpu.memory_space<smem>>
    %c63 = arith.constant 63 : index
    %103 = memref.load %arg1[%c63] : memref<98xf32, #tpu.memory_space<smem>>
    %c64 = arith.constant 64 : index
    %104 = memref.load %arg1[%c64] : memref<98xf32, #tpu.memory_space<smem>>
    %c65 = arith.constant 65 : index
    %105 = memref.load %arg1[%c65] : memref<98xf32, #tpu.memory_space<smem>>
    %c66 = arith.constant 66 : index
    %106 = memref.load %arg1[%c66] : memref<98xf32, #tpu.memory_space<smem>>
    %c67 = arith.constant 67 : index
    %107 = memref.load %arg1[%c67] : memref<98xf32, #tpu.memory_space<smem>>
    %c68 = arith.constant 68 : index
    %108 = memref.load %arg1[%c68] : memref<98xf32, #tpu.memory_space<smem>>
    %c69 = arith.constant 69 : index
    %109 = memref.load %arg1[%c69] : memref<98xf32, #tpu.memory_space<smem>>
    %c70 = arith.constant 70 : index
    %110 = memref.load %arg1[%c70] : memref<98xf32, #tpu.memory_space<smem>>
    %c71 = arith.constant 71 : index
    %111 = memref.load %arg1[%c71] : memref<98xf32, #tpu.memory_space<smem>>
    %c72 = arith.constant 72 : index
    %112 = memref.load %arg1[%c72] : memref<98xf32, #tpu.memory_space<smem>>
    %c73 = arith.constant 73 : index
    %113 = memref.load %arg1[%c73] : memref<98xf32, #tpu.memory_space<smem>>
    %c74 = arith.constant 74 : index
    %114 = memref.load %arg1[%c74] : memref<98xf32, #tpu.memory_space<smem>>
    %c75 = arith.constant 75 : index
    %115 = memref.load %arg1[%c75] : memref<98xf32, #tpu.memory_space<smem>>
    %c76 = arith.constant 76 : index
    %116 = memref.load %arg1[%c76] : memref<98xf32, #tpu.memory_space<smem>>
    %c77 = arith.constant 77 : index
    %117 = memref.load %arg1[%c77] : memref<98xf32, #tpu.memory_space<smem>>
    %c78 = arith.constant 78 : index
    %118 = memref.load %arg1[%c78] : memref<98xf32, #tpu.memory_space<smem>>
    %c79 = arith.constant 79 : index
    %119 = memref.load %arg1[%c79] : memref<98xf32, #tpu.memory_space<smem>>
    %c80 = arith.constant 80 : index
    %120 = memref.load %arg1[%c80] : memref<98xf32, #tpu.memory_space<smem>>
    %c81 = arith.constant 81 : index
    %121 = memref.load %arg1[%c81] : memref<98xf32, #tpu.memory_space<smem>>
    %c82 = arith.constant 82 : index
    %122 = memref.load %arg1[%c82] : memref<98xf32, #tpu.memory_space<smem>>
    %c83 = arith.constant 83 : index
    %123 = memref.load %arg1[%c83] : memref<98xf32, #tpu.memory_space<smem>>
    %c84 = arith.constant 84 : index
    %124 = memref.load %arg1[%c84] : memref<98xf32, #tpu.memory_space<smem>>
    %c85 = arith.constant 85 : index
    %125 = memref.load %arg1[%c85] : memref<98xf32, #tpu.memory_space<smem>>
    %c86 = arith.constant 86 : index
    %126 = memref.load %arg1[%c86] : memref<98xf32, #tpu.memory_space<smem>>
    %c87 = arith.constant 87 : index
    %127 = memref.load %arg1[%c87] : memref<98xf32, #tpu.memory_space<smem>>
    %c88 = arith.constant 88 : index
    %128 = memref.load %arg1[%c88] : memref<98xf32, #tpu.memory_space<smem>>
    %c89 = arith.constant 89 : index
    %129 = memref.load %arg1[%c89] : memref<98xf32, #tpu.memory_space<smem>>
    %c90 = arith.constant 90 : index
    %130 = memref.load %arg1[%c90] : memref<98xf32, #tpu.memory_space<smem>>
    %c91 = arith.constant 91 : index
    %131 = memref.load %arg1[%c91] : memref<98xf32, #tpu.memory_space<smem>>
    %c92 = arith.constant 92 : index
    %132 = memref.load %arg1[%c92] : memref<98xf32, #tpu.memory_space<smem>>
    %c93 = arith.constant 93 : index
    %133 = memref.load %arg1[%c93] : memref<98xf32, #tpu.memory_space<smem>>
    %c94 = arith.constant 94 : index
    %134 = memref.load %arg1[%c94] : memref<98xf32, #tpu.memory_space<smem>>
    %c95 = arith.constant 95 : index
    %135 = memref.load %arg1[%c95] : memref<98xf32, #tpu.memory_space<smem>>
    %c96 = arith.constant 96 : index
    %136 = memref.load %arg1[%c96] : memref<98xf32, #tpu.memory_space<smem>>
    %c97 = arith.constant 97 : index
    %137 = memref.load %arg1[%c97] : memref<98xf32, #tpu.memory_space<smem>>
    %cst_38 = arith.constant 0.000000e+00 : f32
    %138 = vector.broadcast %cst_38 : f32 to vector<2x256xf32>
    %cst_39 = arith.constant 0.000000e+00 : f32
    %139 = vector.broadcast %cst_39 : f32 to vector<2x256xf32>
    %140 = vector.extract_strided_slice %36 {offsets = [0, 0], sizes = [2, 256], strides = [1, 1]} : vector<2x358xf32> to vector<2x256xf32>
    %141 = vector.broadcast %40 : f32 to vector<2x256xf32>
    %142 = arith.mulf %141, %140 : vector<2x256xf32>
    %143 = arith.addf %139, %142 : vector<2x256xf32>
    %144 = vector.extract_strided_slice %38 {offsets = [0, 0], sizes = [2, 256], strides = [1, 1]} : vector<2x358xf32> to vector<2x256xf32>
    %145 = vector.broadcast %89 : f32 to vector<2x256xf32>
    %146 = arith.mulf %145, %144 : vector<2x256xf32>
    %147 = arith.addf %143, %146 : vector<2x256xf32>
    %148 = vector.extract_strided_slice %36 {offsets = [0, 16], sizes = [2, 256], strides = [1, 1]} : vector<2x358xf32> to vector<2x256xf32>
    %149 = vector.broadcast %47 : f32 to vector<2x256xf32>
    %150 = arith.mulf %149, %148 : vector<2x256xf32>
    %151 = arith.addf %147, %150 : vector<2x256xf32>
    %152 = vector.extract_strided_slice %38 {offsets = [0, 16], sizes = [2, 256], strides = [1, 1]} : vector<2x358xf32> to vector<2x256xf32>
    %153 = vector.broadcast %96 : f32 to vector<2x256xf32>
    %154 = arith.mulf %153, %152 : vector<2x256xf32>
    %155 = arith.addf %151, %154 : vector<2x256xf32>
    %156 = vector.extract_strided_slice %36 {offsets = [0, 32], sizes = [2, 256], strides = [1, 1]} : vector<2x358xf32> to vector<2x256xf32>
    %157 = vector.broadcast %54 : f32 to vector<2x256xf32>
    %158 = arith.mulf %157, %156 : vector<2x256xf32>
    %159 = arith.addf %155, %158 : vector<2x256xf32>
    %160 = vector.extract_strided_slice %38 {offsets = [0, 32], sizes = [2, 256], strides = [1, 1]} : vector<2x358xf32> to vector<2x256xf32>
    %161 = vector.broadcast %103 : f32 to vector<2x256xf32>
    %162 = arith.mulf %161, %160 : vector<2x256xf32>
    %163 = arith.addf %159, %162 : vector<2x256xf32>
    %164 = vector.extract_strided_slice %36 {offsets = [0, 48], sizes = [2, 256], strides = [1, 1]} : vector<2x358xf32> to vector<2x256xf32>
    %165 = vector.broadcast %61 : f32 to vector<2x256xf32>
    %166 = arith.mulf %165, %164 : vector<2x256xf32>
    %167 = arith.addf %163, %166 : vector<2x256xf32>
    %168 = vector.extract_strided_slice %38 {offsets = [0, 48], sizes = [2, 256], strides = [1, 1]} : vector<2x358xf32> to vector<2x256xf32>
    %169 = vector.broadcast %110 : f32 to vector<2x256xf32>
    %170 = arith.mulf %169, %168 : vector<2x256xf32>
    %171 = arith.addf %167, %170 : vector<2x256xf32>
    %172 = vector.extract_strided_slice %36 {offsets = [0, 64], sizes = [2, 256], strides = [1, 1]} : vector<2x358xf32> to vector<2x256xf32>
    %173 = vector.broadcast %68 : f32 to vector<2x256xf32>
    %174 = arith.mulf %173, %172 : vector<2x256xf32>
    %175 = arith.addf %171, %174 : vector<2x256xf32>
    %176 = vector.extract_strided_slice %38 {offsets = [0, 64], sizes = [2, 256], strides = [1, 1]} : vector<2x358xf32> to vector<2x256xf32>
    %177 = vector.broadcast %117 : f32 to vector<2x256xf32>
    %178 = arith.mulf %177, %176 : vector<2x256xf32>
    %179 = arith.addf %175, %178 : vector<2x256xf32>
    %180 = vector.extract_strided_slice %36 {offsets = [0, 80], sizes = [2, 256], strides = [1, 1]} : vector<2x358xf32> to vector<2x256xf32>
    %181 = vector.broadcast %75 : f32 to vector<2x256xf32>
    %182 = arith.mulf %181, %180 : vector<2x256xf32>
    %183 = arith.addf %179, %182 : vector<2x256xf32>
    %184 = vector.extract_strided_slice %38 {offsets = [0, 80], sizes = [2, 256], strides = [1, 1]} : vector<2x358xf32> to vector<2x256xf32>
    %185 = vector.broadcast %124 : f32 to vector<2x256xf32>
    %186 = arith.mulf %185, %184 : vector<2x256xf32>
    %187 = arith.addf %183, %186 : vector<2x256xf32>
    %188 = vector.extract_strided_slice %36 {offsets = [0, 96], sizes = [2, 256], strides = [1, 1]} : vector<2x358xf32> to vector<2x256xf32>
    %189 = vector.broadcast %82 : f32 to vector<2x256xf32>
    %190 = arith.mulf %189, %188 : vector<2x256xf32>
    %191 = arith.addf %187, %190 : vector<2x256xf32>
    %192 = vector.extract_strided_slice %38 {offsets = [0, 96], sizes = [2, 256], strides = [1, 1]} : vector<2x358xf32> to vector<2x256xf32>
    %193 = vector.broadcast %131 : f32 to vector<2x256xf32>
    %194 = arith.mulf %193, %192 : vector<2x256xf32>
    %195 = arith.addf %191, %194 : vector<2x256xf32>
    %196 = vector.extract_strided_slice %39 {offsets = [0, 0], sizes = [1, 256], strides = [1, 1]} : vector<7x256xf32> to vector<1x256xf32>
    %197 = vector.broadcast %196 : vector<1x256xf32> to vector<2x256xf32>
    %198 = arith.mulf %195, %197 : vector<2x256xf32>
    %199 = arith.addf %138, %198 : vector<2x256xf32>
    %cst_40 = arith.constant 0.000000e+00 : f32
    %200 = vector.broadcast %cst_40 : f32 to vector<2x256xf32>
    %201 = vector.extract_strided_slice %36 {offsets = [0, 1], sizes = [2, 256], strides = [1, 1]} : vector<2x358xf32> to vector<2x256xf32>
    %202 = vector.broadcast %41 : f32 to vector<2x256xf32>
    %203 = arith.mulf %202, %201 : vector<2x256xf32>
    %204 = arith.addf %200, %203 : vector<2x256xf32>
    %205 = vector.extract_strided_slice %38 {offsets = [0, 1], sizes = [2, 256], strides = [1, 1]} : vector<2x358xf32> to vector<2x256xf32>
    %206 = vector.broadcast %90 : f32 to vector<2x256xf32>
    %207 = arith.mulf %206, %205 : vector<2x256xf32>
    %208 = arith.addf %204, %207 : vector<2x256xf32>
    %209 = vector.extract_strided_slice %36 {offsets = [0, 17], sizes = [2, 256], strides = [1, 1]} : vector<2x358xf32> to vector<2x256xf32>
    %210 = vector.broadcast %48 : f32 to vector<2x256xf32>
    %211 = arith.mulf %210, %209 : vector<2x256xf32>
    %212 = arith.addf %208, %211 : vector<2x256xf32>
    %213 = vector.extract_strided_slice %38 {offsets = [0, 17], sizes = [2, 256], strides = [1, 1]} : vector<2x358xf32> to vector<2x256xf32>
    %214 = vector.broadcast %97 : f32 to vector<2x256xf32>
    %215 = arith.mulf %214, %213 : vector<2x256xf32>
    %216 = arith.addf %212, %215 : vector<2x256xf32>
    %217 = vector.extract_strided_slice %36 {offsets = [0, 33], sizes = [2, 256], strides = [1, 1]} : vector<2x358xf32> to vector<2x256xf32>
    %218 = vector.broadcast %55 : f32 to vector<2x256xf32>
    %219 = arith.mulf %218, %217 : vector<2x256xf32>
    %220 = arith.addf %216, %219 : vector<2x256xf32>
    %221 = vector.extract_strided_slice %38 {offsets = [0, 33], sizes = [2, 256], strides = [1, 1]} : vector<2x358xf32> to vector<2x256xf32>
    %222 = vector.broadcast %104 : f32 to vector<2x256xf32>
    %223 = arith.mulf %222, %221 : vector<2x256xf32>
    %224 = arith.addf %220, %223 : vector<2x256xf32>
    %225 = vector.extract_strided_slice %36 {offsets = [0, 49], sizes = [2, 256], strides = [1, 1]} : vector<2x358xf32> to vector<2x256xf32>
    %226 = vector.broadcast %62 : f32 to vector<2x256xf32>
    %227 = arith.mulf %226, %225 : vector<2x256xf32>
    %228 = arith.addf %224, %227 : vector<2x256xf32>
    %229 = vector.extract_strided_slice %38 {offsets = [0, 49], sizes = [2, 256], strides = [1, 1]} : vector<2x358xf32> to vector<2x256xf32>
    %230 = vector.broadcast %111 : f32 to vector<2x256xf32>
    %231 = arith.mulf %230, %229 : vector<2x256xf32>
    %232 = arith.addf %228, %231 : vector<2x256xf32>
    %233 = vector.extract_strided_slice %36 {offsets = [0, 65], sizes = [2, 256], strides = [1, 1]} : vector<2x358xf32> to vector<2x256xf32>
    %234 = vector.broadcast %69 : f32 to vector<2x256xf32>
    %235 = arith.mulf %234, %233 : vector<2x256xf32>
    %236 = arith.addf %232, %235 : vector<2x256xf32>
    %237 = vector.extract_strided_slice %38 {offsets = [0, 65], sizes = [2, 256], strides = [1, 1]} : vector<2x358xf32> to vector<2x256xf32>
    %238 = vector.broadcast %118 : f32 to vector<2x256xf32>
    %239 = arith.mulf %238, %237 : vector<2x256xf32>
    %240 = arith.addf %236, %239 : vector<2x256xf32>
    %241 = vector.extract_strided_slice %36 {offsets = [0, 81], sizes = [2, 256], strides = [1, 1]} : vector<2x358xf32> to vector<2x256xf32>
    %242 = vector.broadcast %76 : f32 to vector<2x256xf32>
    %243 = arith.mulf %242, %241 : vector<2x256xf32>
    %244 = arith.addf %240, %243 : vector<2x256xf32>
    %245 = vector.extract_strided_slice %38 {offsets = [0, 81], sizes = [2, 256], strides = [1, 1]} : vector<2x358xf32> to vector<2x256xf32>
    %246 = vector.broadcast %125 : f32 to vector<2x256xf32>
    %247 = arith.mulf %246, %245 : vector<2x256xf32>
    %248 = arith.addf %244, %247 : vector<2x256xf32>
    %249 = vector.extract_strided_slice %36 {offsets = [0, 97], sizes = [2, 256], strides = [1, 1]} : vector<2x358xf32> to vector<2x256xf32>
    %250 = vector.broadcast %83 : f32 to vector<2x256xf32>
    %251 = arith.mulf %250, %249 : vector<2x256xf32>
    %252 = arith.addf %248, %251 : vector<2x256xf32>
    %253 = vector.extract_strided_slice %38 {offsets = [0, 97], sizes = [2, 256], strides = [1, 1]} : vector<2x358xf32> to vector<2x256xf32>
    %254 = vector.broadcast %132 : f32 to vector<2x256xf32>
    %255 = arith.mulf %254, %253 : vector<2x256xf32>
    %256 = arith.addf %252, %255 : vector<2x256xf32>
    %257 = vector.extract_strided_slice %39 {offsets = [1, 0], sizes = [1, 256], strides = [1, 1]} : vector<7x256xf32> to vector<1x256xf32>
    %258 = vector.broadcast %257 : vector<1x256xf32> to vector<2x256xf32>
    %259 = arith.mulf %256, %258 : vector<2x256xf32>
    %260 = arith.addf %199, %259 : vector<2x256xf32>
    %cst_41 = arith.constant 0.000000e+00 : f32
    %261 = vector.broadcast %cst_41 : f32 to vector<2x256xf32>
    %262 = vector.extract_strided_slice %36 {offsets = [0, 2], sizes = [2, 256], strides = [1, 1]} : vector<2x358xf32> to vector<2x256xf32>
    %263 = vector.broadcast %42 : f32 to vector<2x256xf32>
    %264 = arith.mulf %263, %262 : vector<2x256xf32>
    %265 = arith.addf %261, %264 : vector<2x256xf32>
    %266 = vector.extract_strided_slice %38 {offsets = [0, 2], sizes = [2, 256], strides = [1, 1]} : vector<2x358xf32> to vector<2x256xf32>
    %267 = vector.broadcast %91 : f32 to vector<2x256xf32>
    %268 = arith.mulf %267, %266 : vector<2x256xf32>
    %269 = arith.addf %265, %268 : vector<2x256xf32>
    %270 = vector.extract_strided_slice %36 {offsets = [0, 18], sizes = [2, 256], strides = [1, 1]} : vector<2x358xf32> to vector<2x256xf32>
    %271 = vector.broadcast %49 : f32 to vector<2x256xf32>
    %272 = arith.mulf %271, %270 : vector<2x256xf32>
    %273 = arith.addf %269, %272 : vector<2x256xf32>
    %274 = vector.extract_strided_slice %38 {offsets = [0, 18], sizes = [2, 256], strides = [1, 1]} : vector<2x358xf32> to vector<2x256xf32>
    %275 = vector.broadcast %98 : f32 to vector<2x256xf32>
    %276 = arith.mulf %275, %274 : vector<2x256xf32>
    %277 = arith.addf %273, %276 : vector<2x256xf32>
    %278 = vector.extract_strided_slice %36 {offsets = [0, 34], sizes = [2, 256], strides = [1, 1]} : vector<2x358xf32> to vector<2x256xf32>
    %279 = vector.broadcast %56 : f32 to vector<2x256xf32>
    %280 = arith.mulf %279, %278 : vector<2x256xf32>
    %281 = arith.addf %277, %280 : vector<2x256xf32>
    %282 = vector.extract_strided_slice %38 {offsets = [0, 34], sizes = [2, 256], strides = [1, 1]} : vector<2x358xf32> to vector<2x256xf32>
    %283 = vector.broadcast %105 : f32 to vector<2x256xf32>
    %284 = arith.mulf %283, %282 : vector<2x256xf32>
    %285 = arith.addf %281, %284 : vector<2x256xf32>
    %286 = vector.extract_strided_slice %36 {offsets = [0, 50], sizes = [2, 256], strides = [1, 1]} : vector<2x358xf32> to vector<2x256xf32>
    %287 = vector.broadcast %63 : f32 to vector<2x256xf32>
    %288 = arith.mulf %287, %286 : vector<2x256xf32>
    %289 = arith.addf %285, %288 : vector<2x256xf32>
    %290 = vector.extract_strided_slice %38 {offsets = [0, 50], sizes = [2, 256], strides = [1, 1]} : vector<2x358xf32> to vector<2x256xf32>
    %291 = vector.broadcast %112 : f32 to vector<2x256xf32>
    %292 = arith.mulf %291, %290 : vector<2x256xf32>
    %293 = arith.addf %289, %292 : vector<2x256xf32>
    %294 = vector.extract_strided_slice %36 {offsets = [0, 66], sizes = [2, 256], strides = [1, 1]} : vector<2x358xf32> to vector<2x256xf32>
    %295 = vector.broadcast %70 : f32 to vector<2x256xf32>
    %296 = arith.mulf %295, %294 : vector<2x256xf32>
    %297 = arith.addf %293, %296 : vector<2x256xf32>
    %298 = vector.extract_strided_slice %38 {offsets = [0, 66], sizes = [2, 256], strides = [1, 1]} : vector<2x358xf32> to vector<2x256xf32>
    %299 = vector.broadcast %119 : f32 to vector<2x256xf32>
    %300 = arith.mulf %299, %298 : vector<2x256xf32>
    %301 = arith.addf %297, %300 : vector<2x256xf32>
    %302 = vector.extract_strided_slice %36 {offsets = [0, 82], sizes = [2, 256], strides = [1, 1]} : vector<2x358xf32> to vector<2x256xf32>
    %303 = vector.broadcast %77 : f32 to vector<2x256xf32>
    %304 = arith.mulf %303, %302 : vector<2x256xf32>
    %305 = arith.addf %301, %304 : vector<2x256xf32>
    %306 = vector.extract_strided_slice %38 {offsets = [0, 82], sizes = [2, 256], strides = [1, 1]} : vector<2x358xf32> to vector<2x256xf32>
    %307 = vector.broadcast %126 : f32 to vector<2x256xf32>
    %308 = arith.mulf %307, %306 : vector<2x256xf32>
    %309 = arith.addf %305, %308 : vector<2x256xf32>
    %310 = vector.extract_strided_slice %36 {offsets = [0, 98], sizes = [2, 256], strides = [1, 1]} : vector<2x358xf32> to vector<2x256xf32>
    %311 = vector.broadcast %84 : f32 to vector<2x256xf32>
    %312 = arith.mulf %311, %310 : vector<2x256xf32>
    %313 = arith.addf %309, %312 : vector<2x256xf32>
    %314 = vector.extract_strided_slice %38 {offsets = [0, 98], sizes = [2, 256], strides = [1, 1]} : vector<2x358xf32> to vector<2x256xf32>
    %315 = vector.broadcast %133 : f32 to vector<2x256xf32>
    %316 = arith.mulf %315, %314 : vector<2x256xf32>
    %317 = arith.addf %313, %316 : vector<2x256xf32>
    %318 = vector.extract_strided_slice %39 {offsets = [2, 0], sizes = [1, 256], strides = [1, 1]} : vector<7x256xf32> to vector<1x256xf32>
    %319 = vector.broadcast %318 : vector<1x256xf32> to vector<2x256xf32>
    %320 = arith.mulf %317, %319 : vector<2x256xf32>
    %321 = arith.addf %260, %320 : vector<2x256xf32>
    %cst_42 = arith.constant 0.000000e+00 : f32
    %322 = vector.broadcast %cst_42 : f32 to vector<2x256xf32>
    %323 = vector.extract_strided_slice %36 {offsets = [0, 3], sizes = [2, 256], strides = [1, 1]} : vector<2x358xf32> to vector<2x256xf32>
    %324 = vector.broadcast %43 : f32 to vector<2x256xf32>
    %325 = arith.mulf %324, %323 : vector<2x256xf32>
    %326 = arith.addf %322, %325 : vector<2x256xf32>
    %327 = vector.extract_strided_slice %38 {offsets = [0, 3], sizes = [2, 256], strides = [1, 1]} : vector<2x358xf32> to vector<2x256xf32>
    %328 = vector.broadcast %92 : f32 to vector<2x256xf32>
    %329 = arith.mulf %328, %327 : vector<2x256xf32>
    %330 = arith.addf %326, %329 : vector<2x256xf32>
    %331 = vector.extract_strided_slice %36 {offsets = [0, 19], sizes = [2, 256], strides = [1, 1]} : vector<2x358xf32> to vector<2x256xf32>
    %332 = vector.broadcast %50 : f32 to vector<2x256xf32>
    %333 = arith.mulf %332, %331 : vector<2x256xf32>
    %334 = arith.addf %330, %333 : vector<2x256xf32>
    %335 = vector.extract_strided_slice %38 {offsets = [0, 19], sizes = [2, 256], strides = [1, 1]} : vector<2x358xf32> to vector<2x256xf32>
    %336 = vector.broadcast %99 : f32 to vector<2x256xf32>
    %337 = arith.mulf %336, %335 : vector<2x256xf32>
    %338 = arith.addf %334, %337 : vector<2x256xf32>
    %339 = vector.extract_strided_slice %36 {offsets = [0, 35], sizes = [2, 256], strides = [1, 1]} : vector<2x358xf32> to vector<2x256xf32>
    %340 = vector.broadcast %57 : f32 to vector<2x256xf32>
    %341 = arith.mulf %340, %339 : vector<2x256xf32>
    %342 = arith.addf %338, %341 : vector<2x256xf32>
    %343 = vector.extract_strided_slice %38 {offsets = [0, 35], sizes = [2, 256], strides = [1, 1]} : vector<2x358xf32> to vector<2x256xf32>
    %344 = vector.broadcast %106 : f32 to vector<2x256xf32>
    %345 = arith.mulf %344, %343 : vector<2x256xf32>
    %346 = arith.addf %342, %345 : vector<2x256xf32>
    %347 = vector.extract_strided_slice %36 {offsets = [0, 51], sizes = [2, 256], strides = [1, 1]} : vector<2x358xf32> to vector<2x256xf32>
    %348 = vector.broadcast %64 : f32 to vector<2x256xf32>
    %349 = arith.mulf %348, %347 : vector<2x256xf32>
    %350 = arith.addf %346, %349 : vector<2x256xf32>
    %351 = vector.extract_strided_slice %38 {offsets = [0, 51], sizes = [2, 256], strides = [1, 1]} : vector<2x358xf32> to vector<2x256xf32>
    %352 = vector.broadcast %113 : f32 to vector<2x256xf32>
    %353 = arith.mulf %352, %351 : vector<2x256xf32>
    %354 = arith.addf %350, %353 : vector<2x256xf32>
    %355 = vector.extract_strided_slice %36 {offsets = [0, 67], sizes = [2, 256], strides = [1, 1]} : vector<2x358xf32> to vector<2x256xf32>
    %356 = vector.broadcast %71 : f32 to vector<2x256xf32>
    %357 = arith.mulf %356, %355 : vector<2x256xf32>
    %358 = arith.addf %354, %357 : vector<2x256xf32>
    %359 = vector.extract_strided_slice %38 {offsets = [0, 67], sizes = [2, 256], strides = [1, 1]} : vector<2x358xf32> to vector<2x256xf32>
    %360 = vector.broadcast %120 : f32 to vector<2x256xf32>
    %361 = arith.mulf %360, %359 : vector<2x256xf32>
    %362 = arith.addf %358, %361 : vector<2x256xf32>
    %363 = vector.extract_strided_slice %36 {offsets = [0, 83], sizes = [2, 256], strides = [1, 1]} : vector<2x358xf32> to vector<2x256xf32>
    %364 = vector.broadcast %78 : f32 to vector<2x256xf32>
    %365 = arith.mulf %364, %363 : vector<2x256xf32>
    %366 = arith.addf %362, %365 : vector<2x256xf32>
    %367 = vector.extract_strided_slice %38 {offsets = [0, 83], sizes = [2, 256], strides = [1, 1]} : vector<2x358xf32> to vector<2x256xf32>
    %368 = vector.broadcast %127 : f32 to vector<2x256xf32>
    %369 = arith.mulf %368, %367 : vector<2x256xf32>
    %370 = arith.addf %366, %369 : vector<2x256xf32>
    %371 = vector.extract_strided_slice %36 {offsets = [0, 99], sizes = [2, 256], strides = [1, 1]} : vector<2x358xf32> to vector<2x256xf32>
    %372 = vector.broadcast %85 : f32 to vector<2x256xf32>
    %373 = arith.mulf %372, %371 : vector<2x256xf32>
    %374 = arith.addf %370, %373 : vector<2x256xf32>
    %375 = vector.extract_strided_slice %38 {offsets = [0, 99], sizes = [2, 256], strides = [1, 1]} : vector<2x358xf32> to vector<2x256xf32>
    %376 = vector.broadcast %134 : f32 to vector<2x256xf32>
    %377 = arith.mulf %376, %375 : vector<2x256xf32>
    %378 = arith.addf %374, %377 : vector<2x256xf32>
    %379 = vector.extract_strided_slice %39 {offsets = [3, 0], sizes = [1, 256], strides = [1, 1]} : vector<7x256xf32> to vector<1x256xf32>
    %380 = vector.broadcast %379 : vector<1x256xf32> to vector<2x256xf32>
    %381 = arith.mulf %378, %380 : vector<2x256xf32>
    %382 = arith.addf %321, %381 : vector<2x256xf32>
    %cst_43 = arith.constant 0.000000e+00 : f32
    %383 = vector.broadcast %cst_43 : f32 to vector<2x256xf32>
    %384 = vector.extract_strided_slice %36 {offsets = [0, 4], sizes = [2, 256], strides = [1, 1]} : vector<2x358xf32> to vector<2x256xf32>
    %385 = vector.broadcast %44 : f32 to vector<2x256xf32>
    %386 = arith.mulf %385, %384 : vector<2x256xf32>
    %387 = arith.addf %383, %386 : vector<2x256xf32>
    %388 = vector.extract_strided_slice %38 {offsets = [0, 4], sizes = [2, 256], strides = [1, 1]} : vector<2x358xf32> to vector<2x256xf32>
    %389 = vector.broadcast %93 : f32 to vector<2x256xf32>
    %390 = arith.mulf %389, %388 : vector<2x256xf32>
    %391 = arith.addf %387, %390 : vector<2x256xf32>
    %392 = vector.extract_strided_slice %36 {offsets = [0, 20], sizes = [2, 256], strides = [1, 1]} : vector<2x358xf32> to vector<2x256xf32>
    %393 = vector.broadcast %51 : f32 to vector<2x256xf32>
    %394 = arith.mulf %393, %392 : vector<2x256xf32>
    %395 = arith.addf %391, %394 : vector<2x256xf32>
    %396 = vector.extract_strided_slice %38 {offsets = [0, 20], sizes = [2, 256], strides = [1, 1]} : vector<2x358xf32> to vector<2x256xf32>
    %397 = vector.broadcast %100 : f32 to vector<2x256xf32>
    %398 = arith.mulf %397, %396 : vector<2x256xf32>
    %399 = arith.addf %395, %398 : vector<2x256xf32>
    %400 = vector.extract_strided_slice %36 {offsets = [0, 36], sizes = [2, 256], strides = [1, 1]} : vector<2x358xf32> to vector<2x256xf32>
    %401 = vector.broadcast %58 : f32 to vector<2x256xf32>
    %402 = arith.mulf %401, %400 : vector<2x256xf32>
    %403 = arith.addf %399, %402 : vector<2x256xf32>
    %404 = vector.extract_strided_slice %38 {offsets = [0, 36], sizes = [2, 256], strides = [1, 1]} : vector<2x358xf32> to vector<2x256xf32>
    %405 = vector.broadcast %107 : f32 to vector<2x256xf32>
    %406 = arith.mulf %405, %404 : vector<2x256xf32>
    %407 = arith.addf %403, %406 : vector<2x256xf32>
    %408 = vector.extract_strided_slice %36 {offsets = [0, 52], sizes = [2, 256], strides = [1, 1]} : vector<2x358xf32> to vector<2x256xf32>
    %409 = vector.broadcast %65 : f32 to vector<2x256xf32>
    %410 = arith.mulf %409, %408 : vector<2x256xf32>
    %411 = arith.addf %407, %410 : vector<2x256xf32>
    %412 = vector.extract_strided_slice %38 {offsets = [0, 52], sizes = [2, 256], strides = [1, 1]} : vector<2x358xf32> to vector<2x256xf32>
    %413 = vector.broadcast %114 : f32 to vector<2x256xf32>
    %414 = arith.mulf %413, %412 : vector<2x256xf32>
    %415 = arith.addf %411, %414 : vector<2x256xf32>
    %416 = vector.extract_strided_slice %36 {offsets = [0, 68], sizes = [2, 256], strides = [1, 1]} : vector<2x358xf32> to vector<2x256xf32>
    %417 = vector.broadcast %72 : f32 to vector<2x256xf32>
    %418 = arith.mulf %417, %416 : vector<2x256xf32>
    %419 = arith.addf %415, %418 : vector<2x256xf32>
    %420 = vector.extract_strided_slice %38 {offsets = [0, 68], sizes = [2, 256], strides = [1, 1]} : vector<2x358xf32> to vector<2x256xf32>
    %421 = vector.broadcast %121 : f32 to vector<2x256xf32>
    %422 = arith.mulf %421, %420 : vector<2x256xf32>
    %423 = arith.addf %419, %422 : vector<2x256xf32>
    %424 = vector.extract_strided_slice %36 {offsets = [0, 84], sizes = [2, 256], strides = [1, 1]} : vector<2x358xf32> to vector<2x256xf32>
    %425 = vector.broadcast %79 : f32 to vector<2x256xf32>
    %426 = arith.mulf %425, %424 : vector<2x256xf32>
    %427 = arith.addf %423, %426 : vector<2x256xf32>
    %428 = vector.extract_strided_slice %38 {offsets = [0, 84], sizes = [2, 256], strides = [1, 1]} : vector<2x358xf32> to vector<2x256xf32>
    %429 = vector.broadcast %128 : f32 to vector<2x256xf32>
    %430 = arith.mulf %429, %428 : vector<2x256xf32>
    %431 = arith.addf %427, %430 : vector<2x256xf32>
    %432 = vector.extract_strided_slice %36 {offsets = [0, 100], sizes = [2, 256], strides = [1, 1]} : vector<2x358xf32> to vector<2x256xf32>
    %433 = vector.broadcast %86 : f32 to vector<2x256xf32>
    %434 = arith.mulf %433, %432 : vector<2x256xf32>
    %435 = arith.addf %431, %434 : vector<2x256xf32>
    %436 = vector.extract_strided_slice %38 {offsets = [0, 100], sizes = [2, 256], strides = [1, 1]} : vector<2x358xf32> to vector<2x256xf32>
    %437 = vector.broadcast %135 : f32 to vector<2x256xf32>
    %438 = arith.mulf %437, %436 : vector<2x256xf32>
    %439 = arith.addf %435, %438 : vector<2x256xf32>
    %440 = vector.extract_strided_slice %39 {offsets = [4, 0], sizes = [1, 256], strides = [1, 1]} : vector<7x256xf32> to vector<1x256xf32>
    %441 = vector.broadcast %440 : vector<1x256xf32> to vector<2x256xf32>
    %442 = arith.mulf %439, %441 : vector<2x256xf32>
    %443 = arith.addf %382, %442 : vector<2x256xf32>
    %cst_44 = arith.constant 0.000000e+00 : f32
    %444 = vector.broadcast %cst_44 : f32 to vector<2x256xf32>
    %445 = vector.extract_strided_slice %36 {offsets = [0, 5], sizes = [2, 256], strides = [1, 1]} : vector<2x358xf32> to vector<2x256xf32>
    %446 = vector.broadcast %45 : f32 to vector<2x256xf32>
    %447 = arith.mulf %446, %445 : vector<2x256xf32>
    %448 = arith.addf %444, %447 : vector<2x256xf32>
    %449 = vector.extract_strided_slice %38 {offsets = [0, 5], sizes = [2, 256], strides = [1, 1]} : vector<2x358xf32> to vector<2x256xf32>
    %450 = vector.broadcast %94 : f32 to vector<2x256xf32>
    %451 = arith.mulf %450, %449 : vector<2x256xf32>
    %452 = arith.addf %448, %451 : vector<2x256xf32>
    %453 = vector.extract_strided_slice %36 {offsets = [0, 21], sizes = [2, 256], strides = [1, 1]} : vector<2x358xf32> to vector<2x256xf32>
    %454 = vector.broadcast %52 : f32 to vector<2x256xf32>
    %455 = arith.mulf %454, %453 : vector<2x256xf32>
    %456 = arith.addf %452, %455 : vector<2x256xf32>
    %457 = vector.extract_strided_slice %38 {offsets = [0, 21], sizes = [2, 256], strides = [1, 1]} : vector<2x358xf32> to vector<2x256xf32>
    %458 = vector.broadcast %101 : f32 to vector<2x256xf32>
    %459 = arith.mulf %458, %457 : vector<2x256xf32>
    %460 = arith.addf %456, %459 : vector<2x256xf32>
    %461 = vector.extract_strided_slice %36 {offsets = [0, 37], sizes = [2, 256], strides = [1, 1]} : vector<2x358xf32> to vector<2x256xf32>
    %462 = vector.broadcast %59 : f32 to vector<2x256xf32>
    %463 = arith.mulf %462, %461 : vector<2x256xf32>
    %464 = arith.addf %460, %463 : vector<2x256xf32>
    %465 = vector.extract_strided_slice %38 {offsets = [0, 37], sizes = [2, 256], strides = [1, 1]} : vector<2x358xf32> to vector<2x256xf32>
    %466 = vector.broadcast %108 : f32 to vector<2x256xf32>
    %467 = arith.mulf %466, %465 : vector<2x256xf32>
    %468 = arith.addf %464, %467 : vector<2x256xf32>
    %469 = vector.extract_strided_slice %36 {offsets = [0, 53], sizes = [2, 256], strides = [1, 1]} : vector<2x358xf32> to vector<2x256xf32>
    %470 = vector.broadcast %66 : f32 to vector<2x256xf32>
    %471 = arith.mulf %470, %469 : vector<2x256xf32>
    %472 = arith.addf %468, %471 : vector<2x256xf32>
    %473 = vector.extract_strided_slice %38 {offsets = [0, 53], sizes = [2, 256], strides = [1, 1]} : vector<2x358xf32> to vector<2x256xf32>
    %474 = vector.broadcast %115 : f32 to vector<2x256xf32>
    %475 = arith.mulf %474, %473 : vector<2x256xf32>
    %476 = arith.addf %472, %475 : vector<2x256xf32>
    %477 = vector.extract_strided_slice %36 {offsets = [0, 69], sizes = [2, 256], strides = [1, 1]} : vector<2x358xf32> to vector<2x256xf32>
    %478 = vector.broadcast %73 : f32 to vector<2x256xf32>
    %479 = arith.mulf %478, %477 : vector<2x256xf32>
    %480 = arith.addf %476, %479 : vector<2x256xf32>
    %481 = vector.extract_strided_slice %38 {offsets = [0, 69], sizes = [2, 256], strides = [1, 1]} : vector<2x358xf32> to vector<2x256xf32>
    %482 = vector.broadcast %122 : f32 to vector<2x256xf32>
    %483 = arith.mulf %482, %481 : vector<2x256xf32>
    %484 = arith.addf %480, %483 : vector<2x256xf32>
    %485 = vector.extract_strided_slice %36 {offsets = [0, 85], sizes = [2, 256], strides = [1, 1]} : vector<2x358xf32> to vector<2x256xf32>
    %486 = vector.broadcast %80 : f32 to vector<2x256xf32>
    %487 = arith.mulf %486, %485 : vector<2x256xf32>
    %488 = arith.addf %484, %487 : vector<2x256xf32>
    %489 = vector.extract_strided_slice %38 {offsets = [0, 85], sizes = [2, 256], strides = [1, 1]} : vector<2x358xf32> to vector<2x256xf32>
    %490 = vector.broadcast %129 : f32 to vector<2x256xf32>
    %491 = arith.mulf %490, %489 : vector<2x256xf32>
    %492 = arith.addf %488, %491 : vector<2x256xf32>
    %493 = vector.extract_strided_slice %36 {offsets = [0, 101], sizes = [2, 256], strides = [1, 1]} : vector<2x358xf32> to vector<2x256xf32>
    %494 = vector.broadcast %87 : f32 to vector<2x256xf32>
    %495 = arith.mulf %494, %493 : vector<2x256xf32>
    %496 = arith.addf %492, %495 : vector<2x256xf32>
    %497 = vector.extract_strided_slice %38 {offsets = [0, 101], sizes = [2, 256], strides = [1, 1]} : vector<2x358xf32> to vector<2x256xf32>
    %498 = vector.broadcast %136 : f32 to vector<2x256xf32>
    %499 = arith.mulf %498, %497 : vector<2x256xf32>
    %500 = arith.addf %496, %499 : vector<2x256xf32>
    %501 = vector.extract_strided_slice %39 {offsets = [5, 0], sizes = [1, 256], strides = [1, 1]} : vector<7x256xf32> to vector<1x256xf32>
    %502 = vector.broadcast %501 : vector<1x256xf32> to vector<2x256xf32>
    %503 = arith.mulf %500, %502 : vector<2x256xf32>
    %504 = arith.addf %443, %503 : vector<2x256xf32>
    %cst_45 = arith.constant 0.000000e+00 : f32
    %505 = vector.broadcast %cst_45 : f32 to vector<2x256xf32>
    %506 = vector.extract_strided_slice %36 {offsets = [0, 6], sizes = [2, 256], strides = [1, 1]} : vector<2x358xf32> to vector<2x256xf32>
    %507 = vector.broadcast %46 : f32 to vector<2x256xf32>
    %508 = arith.mulf %507, %506 : vector<2x256xf32>
    %509 = arith.addf %505, %508 : vector<2x256xf32>
    %510 = vector.extract_strided_slice %38 {offsets = [0, 6], sizes = [2, 256], strides = [1, 1]} : vector<2x358xf32> to vector<2x256xf32>
    %511 = vector.broadcast %95 : f32 to vector<2x256xf32>
    %512 = arith.mulf %511, %510 : vector<2x256xf32>
    %513 = arith.addf %509, %512 : vector<2x256xf32>
    %514 = vector.extract_strided_slice %36 {offsets = [0, 22], sizes = [2, 256], strides = [1, 1]} : vector<2x358xf32> to vector<2x256xf32>
    %515 = vector.broadcast %53 : f32 to vector<2x256xf32>
    %516 = arith.mulf %515, %514 : vector<2x256xf32>
    %517 = arith.addf %513, %516 : vector<2x256xf32>
    %518 = vector.extract_strided_slice %38 {offsets = [0, 22], sizes = [2, 256], strides = [1, 1]} : vector<2x358xf32> to vector<2x256xf32>
    %519 = vector.broadcast %102 : f32 to vector<2x256xf32>
    %520 = arith.mulf %519, %518 : vector<2x256xf32>
    %521 = arith.addf %517, %520 : vector<2x256xf32>
    %522 = vector.extract_strided_slice %36 {offsets = [0, 38], sizes = [2, 256], strides = [1, 1]} : vector<2x358xf32> to vector<2x256xf32>
    %523 = vector.broadcast %60 : f32 to vector<2x256xf32>
    %524 = arith.mulf %523, %522 : vector<2x256xf32>
    %525 = arith.addf %521, %524 : vector<2x256xf32>
    %526 = vector.extract_strided_slice %38 {offsets = [0, 38], sizes = [2, 256], strides = [1, 1]} : vector<2x358xf32> to vector<2x256xf32>
    %527 = vector.broadcast %109 : f32 to vector<2x256xf32>
    %528 = arith.mulf %527, %526 : vector<2x256xf32>
    %529 = arith.addf %525, %528 : vector<2x256xf32>
    %530 = vector.extract_strided_slice %36 {offsets = [0, 54], sizes = [2, 256], strides = [1, 1]} : vector<2x358xf32> to vector<2x256xf32>
    %531 = vector.broadcast %67 : f32 to vector<2x256xf32>
    %532 = arith.mulf %531, %530 : vector<2x256xf32>
    %533 = arith.addf %529, %532 : vector<2x256xf32>
    %534 = vector.extract_strided_slice %38 {offsets = [0, 54], sizes = [2, 256], strides = [1, 1]} : vector<2x358xf32> to vector<2x256xf32>
    %535 = vector.broadcast %116 : f32 to vector<2x256xf32>
    %536 = arith.mulf %535, %534 : vector<2x256xf32>
    %537 = arith.addf %533, %536 : vector<2x256xf32>
    %538 = vector.extract_strided_slice %36 {offsets = [0, 70], sizes = [2, 256], strides = [1, 1]} : vector<2x358xf32> to vector<2x256xf32>
    %539 = vector.broadcast %74 : f32 to vector<2x256xf32>
    %540 = arith.mulf %539, %538 : vector<2x256xf32>
    %541 = arith.addf %537, %540 : vector<2x256xf32>
    %542 = vector.extract_strided_slice %38 {offsets = [0, 70], sizes = [2, 256], strides = [1, 1]} : vector<2x358xf32> to vector<2x256xf32>
    %543 = vector.broadcast %123 : f32 to vector<2x256xf32>
    %544 = arith.mulf %543, %542 : vector<2x256xf32>
    %545 = arith.addf %541, %544 : vector<2x256xf32>
    %546 = vector.extract_strided_slice %36 {offsets = [0, 86], sizes = [2, 256], strides = [1, 1]} : vector<2x358xf32> to vector<2x256xf32>
    %547 = vector.broadcast %81 : f32 to vector<2x256xf32>
    %548 = arith.mulf %547, %546 : vector<2x256xf32>
    %549 = arith.addf %545, %548 : vector<2x256xf32>
    %550 = vector.extract_strided_slice %38 {offsets = [0, 86], sizes = [2, 256], strides = [1, 1]} : vector<2x358xf32> to vector<2x256xf32>
    %551 = vector.broadcast %130 : f32 to vector<2x256xf32>
    %552 = arith.mulf %551, %550 : vector<2x256xf32>
    %553 = arith.addf %549, %552 : vector<2x256xf32>
    %554 = vector.extract_strided_slice %36 {offsets = [0, 102], sizes = [2, 256], strides = [1, 1]} : vector<2x358xf32> to vector<2x256xf32>
    %555 = vector.broadcast %88 : f32 to vector<2x256xf32>
    %556 = arith.mulf %555, %554 : vector<2x256xf32>
    %557 = arith.addf %553, %556 : vector<2x256xf32>
    %558 = vector.extract_strided_slice %38 {offsets = [0, 102], sizes = [2, 256], strides = [1, 1]} : vector<2x358xf32> to vector<2x256xf32>
    %559 = vector.broadcast %137 : f32 to vector<2x256xf32>
    %560 = arith.mulf %559, %558 : vector<2x256xf32>
    %561 = arith.addf %557, %560 : vector<2x256xf32>
    %562 = vector.extract_strided_slice %39 {offsets = [6, 0], sizes = [1, 256], strides = [1, 1]} : vector<7x256xf32> to vector<1x256xf32>
    %563 = vector.broadcast %562 : vector<1x256xf32> to vector<2x256xf32>
    %564 = arith.mulf %561, %563 : vector<2x256xf32>
    %565 = arith.addf %504, %564 : vector<2x256xf32>
    %566 = arith.negf %565 : vector<2x256xf32>
    %567 = math.exp %566 : vector<2x256xf32>
    %cst_46 = arith.constant 1.000000e+00 : f32
    %568 = vector.broadcast %cst_46 : f32 to vector<2x256xf32>
    %569 = arith.addf %568, %567 : vector<2x256xf32>
    %570 = arith.divf %568, %569 : vector<2x256xf32>
    %c0_47 = arith.constant 0 : index
    %c0_48 = arith.constant 0 : index
    %571 = vector.load %arg4[%c0_47, %c0_48] : memref<2x256xf32, #tpu.memory_space<vmem>>, vector<2x256xf32>
    tpu.vector_store %arg4[%c0_47, %c0_48], %570 {strides = array<i32>} : memref<2x256xf32, #tpu.memory_space<vmem>>, vector<2x256xf32>,
    return
  }
  func.func @transform_0(%arg0: i32) -> i32 {
    %c0_i32 = arith.constant 0 : i32
    %c0_i32_0 = arith.constant 0 : i32
    return %c0_i32 : i32
  }
  func.func @transform_1(%arg0: i32) -> (i32, i32) {
    %c0_i32 = arith.constant 0 : i32
    %c0_i32_0 = arith.constant 0 : i32
    %c0_i32_1 = arith.constant 0 : i32
    return %c0_i32, %c0_i32_0 : i32, i32
  }
  func.func @transform_2(%arg0: i32) -> (i32, i32, i32) {
    %c0_i32 = arith.constant 0 : i32
    %c0_i32_0 = arith.constant 0 : i32
    %c0_i32_1 = arith.constant 0 : i32
    return %arg0, %c0_i32, %c0_i32_0 : i32, i32, i32
  }
  func.func @transform_3(%arg0: i32) -> (i32, i32) {
    %c0_i32 = arith.constant 0 : i32
    %c0_i32_0 = arith.constant 0 : i32
    return %arg0, %c0_i32 : i32, i32
  }
}

</mosaic_0001>

<llo_original>
// kernel: tpu_custom_call.1
$region0: #{tpu_custom_call.1}
  #allocation0 [shape = 'u32[]', space=smem, size = 0x4, offset = 0x4, fixed_abs, tag = 'smem constant byte address 0x4 - core index']
  #allocation1 [shape = 'u32[144,128]{1,0:T(1,128)}', space=vmem, size = 0x12000, scoped, tag = 'internal scratch']
  #allocation2 [shape = 'f32[2,2,358]{2,1,0:T(2,128)}', space=vmem, size = 0x1800, scoped, tag = 'scratch operand']
  %s0 = inlined_call_operand.hbm [shape: f32[98], index: 0, kind: input, shape index: {}]
  %s1 = inlined_call_operand.hbm [shape: f32[7,256], index: 1, kind: input, shape index: {}]
  %s2 = inlined_call_operand.hbm [shape: f32[2,4,256], index: 2, kind: input, shape index: {}]
  %s3 = inlined_call_operand.hbm [shape: f32[2,256], index: 3, kind: output, shape index: {}]
  %s4 = sld [smem:[#allocation0]]
  $region34: #{tpu_custom_call.1} parent=0
    _
  %s6 = ssub.s32 1, %s4
  %s7 = scalar_select 0, %s6, %s4
  $region1: #{tpu_custom_call.1} parent=0
    #allocation3 [shape = 'u8[512]{0}', space=smem, size = 0x200, scoped, tag = 'input window, operand 0, single buffered']
    #allocation4 [shape = 's32[1]{0}', space=sflag, size = 0x4, scoped, tag = 'scoped memory for tpu_custom_call.1']
    #allocation5 [shape = 's32[1]{0}', space=sflag, size = 0x4, scoped, tag = 'scoped memory for tpu_custom_call.1']
    #allocation6 [shape = 's32[1]{0}', space=sflag, size = 0x4, scoped, tag = 'scoped memory for tpu_custom_call.1']
    #allocation7 [shape = 'u8[8192]{0}', space=vmem, size = 0x2000, scoped, tag = 'input window, operand 1, single buffered']
    #allocation8 [shape = 'u8[8192]{0}', space=vmem, size = 0x2000, scoped, tag = 'input window, operand 2, single buffered']
    #allocation9 [shape = 's32[1]{0}', space=sflag, size = 0x4, scoped, tag = 'scoped memory for tpu_custom_call.1']
    #allocation10 [shape = 'u8[2048]{0}', space=vmem, size = 0x800, scoped, tag = 'output window, operand 0, single buffered']
    %8 = vsyncpa [#allocation6], 0
    %9 = vsyncpa [#allocation4], 0
    %10 = vsyncpa [#allocation9], 0
    %11 = vsyncpa [#allocation5], 0
    // Predicated region
    $region2: #{tpu_custom_call.1} parent=1 // pred_check
      _
    $region3: #{tpu_custom_call.1} parent=1 // pred_check_branch
      %13 = sbr.rel (0) target = $region5
    $region4: #{tpu_custom_call.1} parent=1 // pred_region
      %s15 = ssub.s32 16, 16
      %16 = vsyncadd [#allocation6], %s15
      %19 = dma.hbm_to_smem %s0, 16, [#allocation3], [#allocation6]
    $region5: #{tpu_custom_call.1} parent=1 // pred_fallthru
      _
    // Predicated region
    $region6: #{tpu_custom_call.1} parent=1 // pred_check
      _
    $region7: #{tpu_custom_call.1} parent=1 // pred_check_branch
      %21 = sbr.rel (0) target = $region9
    $region8: #{tpu_custom_call.1} parent=1 // pred_region
      %s23 = ssub.s32 256, 256
      %24 = vsyncadd [#allocation4], %s23
      %s26 = sshll.u32 [#allocation7], 4
      %s27 = int_to_ptr.vmem [resolvable:$true] %s26
      %29 = dma.hbm_to_vmem [thread:$0]  %s1, 256, %s27, [#allocation4]
    $region9: #{tpu_custom_call.1} parent=1 // pred_fallthru
      _
    // Predicated region
    $region10: #{tpu_custom_call.1} parent=1 // pred_check
      _
    $region11: #{tpu_custom_call.1} parent=1 // pred_check_branch
      %31 = sbr.rel (0) target = $region13
    $region12: #{tpu_custom_call.1} parent=1 // pred_region
      %s33 = ssub.s32 256, 256
      %34 = vsyncadd [#allocation9], %s33
      %s35 = sshll.u32 [#allocation8], 4
      %s36 = int_to_ptr.vmem [resolvable:$true] %s35
      %41 = dma.hbm_to_vmem [thread:$0]  %s2, 256, %s36, [#allocation9], 128, 128, 8
    $region13: #{tpu_custom_call.1} parent=1 // pred_fallthru
      _
    // Predicated region
    $region14: #{tpu_custom_call.1} parent=1 // pred_check
      _
    $region15: #{tpu_custom_call.1} parent=1 // pred_check_branch
      %43 = sbr.rel (0) target = $region17
    $region16: #{tpu_custom_call.1} parent=1 // pred_region
      %44 = dma.done [#allocation6], 16
    $region17: #{tpu_custom_call.1} parent=1 // pred_fallthru
      _
    // Predicated region
    $region18: #{tpu_custom_call.1} parent=1 // pred_check
      _
    $region19: #{tpu_custom_call.1} parent=1 // pred_check_branch
      %46 = sbr.rel (0) target = $region21
    $region20: #{tpu_custom_call.1} parent=1 // pred_region
      %47 = dma.done [#allocation4], 256
    $region21: #{tpu_custom_call.1} parent=1 // pred_fallthru
      _
    // Predicated region
    $region22: #{tpu_custom_call.1} parent=1 // pred_check
      _
    $region23: #{tpu_custom_call.1} parent=1 // pred_check_branch
      %49 = sbr.rel (0) target = $region25
    $region24: #{tpu_custom_call.1} parent=1 // pred_region
      %50 = dma.done [#allocation9], 256
    $region25: #{tpu_custom_call.1} parent=1 // pred_fallthru
      _
    %51 = sfence
    %v52 = vld [vmem:[#allocation8] ss:$4 sm:$0x3]
    %s53 = scalar_lea.vmem [#allocation8], 8
    %v54 = vld [vmem:[%s53] ss:$4 sm:$0x3]
    %s55 = scalar_lea.vmem [#allocation8], 1
    %v56 = vld [vmem:[%s55] ss:$4 sm:$0x3]
    %s57 = scalar_lea.vmem [#allocation8], 9
    %v58 = vld [vmem:[%s57] ss:$4 sm:$0x3]
    %v59 = vadd.f32 %v52, %v56
    %v60 = vadd.f32 %v54, %v58
    %v61 = vmax.f32 %v52, %v56
    %v62 = vmax.f32 %v54, %v58
    %s63 = scalar_lea.vmem [#allocation8], 2
    %v64 = vld [vmem:[%s63] ss:$4 sm:$0x3]
    %s65 = scalar_lea.vmem [#allocation8], 10
    %v66 = vld [vmem:[%s65] ss:$4 sm:$0x3]
    %v67 = vadd.f32 %v59, %v64
    %v68 = vadd.f32 %v60, %v66
    %v69 = vmax.f32 %v61, %v64
    %v70 = vmax.f32 %v62, %v66
    %s71 = scalar_lea.vmem [#allocation8], 3
    %v72 = vld [vmem:[%s71] ss:$4 sm:$0x3]
    %s73 = scalar_lea.vmem [#allocation8], 11
    %v74 = vld [vmem:[%s73] ss:$4 sm:$0x3]
    %v75 = vadd.f32 %v67, %v72
    %v76 = vadd.f32 %v68, %v74
    %v77 = vmax.f32 %v69, %v72
    %v78 = vmax.f32 %v70, %v74
    %v79 = vmul.f32 %v75, 0.25
    %v80 = vmul.f32 %v76, 0.25
    %vm81 = vcmask 410624
    %82 = vst.msk [vmem:[#allocation2] sm:$0x3] %vm81, 0.0
    %vm83 = vcmask 828824
    %84 = vst.msk [vmem:[#allocation2 + $0x4] sm:$0x3] %vm83, 0.0
    %s85 = scalar_lea.vmem [#allocation2], 6
    %86 = vst.msk [vmem:[%s85] sm:$0x3] %vm81, 0.0
    %87 = vst.msk [vmem:[%s85 + $0x4] sm:$0x3] %vm83, 0.0
    %v90 = vcombine.low %v79, %v80
    %v92 = vunpack.c.l.s4 1935823168
    %v93 = vunpack.c.0.s8 %v92
    %v94 = vlaneseq
    %v95 = vshrl.u32 %v94, 7
    %v96 = vsub.s32 %v93, %v95
    %v97 = vrot.slane %v90, %v96
    %98 = vrot.lane.b32.xlu0 %v97, 51
    %v99 = vpop.permute.xlu0 %98
    %v100 = vrot.slane %v99, 6
    %vm101 = vcmask 416768
    %v102 = vsel %vm101, %v100, %v99
    %vm104 = vcmask 1041816
    %vm105 = vcmask 1043458
    %vm106 = vmor %vm105, %vm104
    %vm107 = vcmask 414724
    %vm108 = vmor %vm107, %vm106
    %109 = vst.msk [vmem:[#allocation2] sm:$0x3f] %vm108, %v102
    %v112 = vcombine.low %v77, %v78
    %v114 = vunpack.c.l.s4 1935823168
    %v115 = vunpack.c.0.s8 %v114
    %v116 = vlaneseq
    %v117 = vshrl.u32 %v116, 7
    %v118 = vsub.s32 %v115, %v117
    %v119 = vrot.slane %v112, %v118
    %120 = vrot.lane.b32.xlu0 %v119, 51
    %v121 = vpop.permute.xlu0 %120
    %v122 = vrot.slane %v121, 6
    %v123 = vsel %vm101, %v122, %v121
    %125 = vst.msk [vmem:[%s85] sm:$0x3f] %vm108, %v123
    %v126 = vld [vmem:[#allocation2] sm:$0x3f]
    %v127 = vld [vmem:[%s85] sm:$0x3f]
    %v128 = vld [vmem:[#allocation7] sm:$0x7f]
    %v129 = vld [vmem:[#allocation7 + $0x8] sm:$0x7f]
    %s130 = sld [smem:[#allocation3]]
    %s131 = sld [smem:[#allocation3 + $0x1]]
    %s132 = sld [smem:[#allocation3 + $0x2]]
    %s133 = sld [smem:[#allocation3 + $0x3]]
    %s134 = sld [smem:[#allocation3 + $0x4]]
    %s135 = sld [smem:[#allocation3 + $0x5]]
    %s136 = sld [smem:[#allocation3 + $0x6]]
    %s137 = sld [smem:[#allocation3 + $0x7]]
    %s138 = sld [smem:[#allocation3 + $0x8]]
    %s139 = sld [smem:[#allocation3 + $0x9]]
    %s140 = sld [smem:[#allocation3 + $0xa]]
    %s141 = sld [smem:[#allocation3 + $0xb]]
    %s142 = sld [smem:[#allocation3 + $0xc]]
    %s143 = sld [smem:[#allocation3 + $0xd]]
    %s144 = sld [smem:[#allocation3 + $0xe]]
    %s145 = sld [smem:[#allocation3 + $0xf]]
    %s146 = sld [smem:[#allocation3 + $0x10]]
    %s147 = sld [smem:[#allocation3 + $0x11]]
    %s148 = sld [smem:[#allocation3 + $0x12]]
    %s149 = sld [smem:[#allocation3 + $0x13]]
    %s150 = sld [smem:[#allocation3 + $0x14]]
    %s151 = sld [smem:[#allocation3 + $0x15]]
    %s152 = sld [smem:[#allocation3 + $0x16]]
    %s153 = sld [smem:[#allocation3 + $0x17]]
    %s154 = sld [smem:[#allocation3 + $0x18]]
    %s155 = sld [smem:[#allocation3 + $0x19]]
    %s156 = sld [smem:[#allocation3 + $0x1a]]
    %s157 = sld [smem:[#allocation3 + $0x1b]]
    %s158 = sld [smem:[#allocation3 + $0x1c]]
    %s159 = sld [smem:[#allocation3 + $0x1d]]
    %s160 = sld [smem:[#allocation3 + $0x1e]]
    %s161 = sld [smem:[#allocation3 + $0x1f]]
    %s162 = sld [smem:[#allocation3 + $0x20]]
    %s163 = sld [smem:[#allocation3 + $0x21]]
    %s164 = sld [smem:[#allocation3 + $0x22]]
    %s165 = sld [smem:[#allocation3 + $0x23]]
    %s166 = sld [smem:[#allocation3 + $0x24]]
    %s167 = sld [smem:[#allocation3 + $0x25]]
    %s168 = sld [smem:[#allocation3 + $0x26]]
    %s169 = sld [smem:[#allocation3 + $0x27]]
    %s170 = sld [smem:[#allocation3 + $0x28]]
    %s171 = sld [smem:[#allocation3 + $0x29]]
    %s172 = sld [smem:[#allocation3 + $0x2a]]
    %s173 = sld [smem:[#allocation3 + $0x2b]]
    %s174 = sld [smem:[#allocation3 + $0x2c]]
    %s175 = sld [smem:[#allocation3 + $0x2d]]
    %s176 = sld [smem:[#allocation3 + $0x2e]]
    %s177 = sld [smem:[#allocation3 + $0x2f]]
    %s178 = sld [smem:[#allocation3 + $0x30]]
    %s179 = sld [smem:[#allocation3 + $0x31]]
    %s180 = sld [smem:[#allocation3 + $0x32]]
    %s181 = sld [smem:[#allocation3 + $0x33]]
    %s182 = sld [smem:[#allocation3 + $0x34]]
    %s183 = sld [smem:[#allocation3 + $0x35]]
    %s184 = sld [smem:[#allocation3 + $0x36]]
    %s185 = sld [smem:[#allocation3 + $0x37]]
    %s186 = sld [smem:[#allocation3 + $0x38]]
    %s187 = sld [smem:[#allocation3 + $0x39]]
    %s188 = sld [smem:[#allocation3 + $0x3a]]
    %s189 = sld [smem:[#allocation3 + $0x3b]]
    %s190 = sld [smem:[#allocation3 + $0x3c]]
    %s191 = sld [smem:[#allocation3 + $0x3d]]
    %s192 = sld [smem:[#allocation3 + $0x3e]]
    %s193 = sld [smem:[#allocation3 + $0x3f]]
    %s194 = sld [smem:[#allocation3 + $0x40]]
    %s195 = sld [smem:[#allocation3 + $0x41]]
    %s196 = sld [smem:[#allocation3 + $0x42]]
    %s197 = sld [smem:[#allocation3 + $0x43]]
    %s198 = sld [smem:[#allocation3 + $0x44]]
    %s199 = sld [smem:[#allocation3 + $0x45]]
    %s200 = sld [smem:[#allocation3 + $0x46]]
    %s201 = sld [smem:[#allocation3 + $0x47]]
    %s202 = sld [smem:[#allocation3 + $0x48]]
    %s203 = sld [smem:[#allocation3 + $0x49]]
    %s204 = sld [smem:[#allocation3 + $0x4a]]
    %s205 = sld [smem:[#allocation3 + $0x4b]]
    %s206 = sld [smem:[#allocation3 + $0x4c]]
    %s207 = sld [smem:[#allocation3 + $0x4d]]
    %s208 = sld [smem:[#allocation3 + $0x4e]]
    %s209 = sld [smem:[#allocation3 + $0x4f]]
    %s210 = sld [smem:[#allocation3 + $0x50]]
    %s211 = sld [smem:[#allocation3 + $0x51]]
    %s212 = sld [smem:[#allocation3 + $0x52]]
    %s213 = sld [smem:[#allocation3 + $0x53]]
    %s214 = sld [smem:[#allocation3 + $0x54]]
    %s215 = sld [smem:[#allocation3 + $0x55]]
    %s216 = sld [smem:[#allocation3 + $0x56]]
    %s217 = sld [smem:[#allocation3 + $0x57]]
    %s218 = sld [smem:[#allocation3 + $0x58]]
    %s219 = sld [smem:[#allocation3 + $0x59]]
    %s220 = sld [smem:[#allocation3 + $0x5a]]
    %s221 = sld [smem:[#allocation3 + $0x5b]]
    %s222 = sld [smem:[#allocation3 + $0x5c]]
    %s223 = sld [smem:[#allocation3 + $0x5d]]
    %s224 = sld [smem:[#allocation3 + $0x5e]]
    %s225 = sld [smem:[#allocation3 + $0x5f]]
    %s226 = sld [smem:[#allocation3 + $0x60]]
    %s227 = sld [smem:[#allocation3 + $0x61]]
    %v228 = vstv %s130
    %v229 = vmul.f32 %v228, %v126
    %v230 = vadd.f32 %v229, 0.0
    %v231 = vstv %s179
    %v232 = vmul.f32 %v231, %v127
    %v233 = vadd.f32 %v230, %v232
    %v234 = vstv %s137
    %v235 = vmul.f32 %v234, %v126
    %237 = vrot.lane.b32.xlu0 %v235, 112
    %v238 = vpop.permute.xlu0 %237
    %v239 = vrot.slane %v238, 2
    %vm240 = vcmask 916480
    %v241 = vsel %vm240, %v238, %v239
    %v243 = vadd.f32 %v233, %v241
    %v244 = vstv %s186
    %v245 = vmul.f32 %v244, %v127
    %247 = vrot.lane.b32.xlu0 %v245, 112
    %v248 = vpop.permute.xlu0 %247
    %v249 = vrot.slane %v248, 2
    %v250 = vsel %vm240, %v248, %v249
    %v252 = vadd.f32 %v243, %v250
    %v253 = vstv %s144
    %v254 = vmul.f32 %v253, %v126
    %256 = vrot.lane.b32.xlu0 %v254, 96
    %v257 = vpop.permute.xlu0 %256
    %v258 = vrot.slane %v257, 2
    %vm259 = vcmask 785408
    %v260 = vsel %vm259, %v257, %v258
    %v262 = vadd.f32 %v252, %v260
    %v263 = vstv %s193
    %v264 = vmul.f32 %v263, %v127
    %266 = vrot.lane.b32.xlu0 %v264, 96
    %v267 = vpop.permute.xlu0 %266
    %v268 = vrot.slane %v267, 2
    %v269 = vsel %vm259, %v267, %v268
    %v271 = vadd.f32 %v262, %v269
    %v272 = vstv %s151
    %v273 = vmul.f32 %v272, %v126
    %275 = vrot.lane.b32.xlu0 %v273, 80
    %v276 = vpop.permute.xlu0 %275
    %v277 = vrot.slane %v276, 2
    %vm278 = vcmask 654336
    %v279 = vsel %vm278, %v276, %v277
    %v281 = vadd.f32 %v271, %v279
    %v282 = vstv %s200
    %v283 = vmul.f32 %v282, %v127
    %285 = vrot.lane.b32.xlu0 %v283, 80
    %v286 = vpop.permute.xlu0 %285
    %v287 = vrot.slane %v286, 2
    %v288 = vsel %vm278, %v286, %v287
    %v290 = vadd.f32 %v281, %v288
    %v291 = vstv %s158
    %v292 = vmul.f32 %v291, %v126
    %294 = vrot.lane.b32.xlu0 %v292, 64
    %v295 = vpop.permute.xlu0 %294
    %v296 = vrot.slane %v295, 2
    %vm297 = vcmask 523264
    %v298 = vsel %vm297, %v295, %v296
    %v300 = vadd.f32 %v290, %v298
    %v301 = vstv %s207
    %v302 = vmul.f32 %v301, %v127
    %304 = vrot.lane.b32.xlu0 %v302, 64
    %v305 = vpop.permute.xlu0 %304
    %v306 = vrot.slane %v305, 2
    %v307 = vsel %vm297, %v305, %v306
    %v309 = vadd.f32 %v300, %v307
    %v310 = vstv %s165
    %v311 = vmul.f32 %v310, %v126
    %313 = vrot.lane.b32.xlu0 %v311, 48
    %v314 = vpop.permute.xlu0 %313
    %v315 = vrot.slane %v314, 2
    %vm316 = vcmask 392192
    %v317 = vsel %vm316, %v314, %v315
    %v319 = vadd.f32 %v309, %v317
    %v320 = vstv %s214
    %v321 = vmul.f32 %v320, %v127
    %323 = vrot.lane.b32.xlu0 %v321, 48
    %v324 = vpop.permute.xlu0 %323
    %v325 = vrot.slane %v324, 2
    %v326 = vsel %vm316, %v324, %v325
    %v328 = vadd.f32 %v319, %v326
    %v329 = vstv %s172
    %v330 = vmul.f32 %v329, %v126
    %332 = vrot.lane.b32.xlu0 %v330, 32
    %v333 = vpop.permute.xlu0 %332
    %v334 = vrot.slane %v333, 2
    %vm335 = vcmask 261120
    %v336 = vsel %vm335, %v333, %v334
    %v338 = vadd.f32 %v328, %v336
    %v339 = vstv %s221
    %v340 = vmul.f32 %v339, %v127
    %342 = vrot.lane.b32.xlu0 %v340, 32
    %v343 = vpop.permute.xlu0 %342
    %v344 = vrot.slane %v343, 2
    %v345 = vsel %vm335, %v343, %v344
    %v347 = vadd.f32 %v338, %v345
    %v348 = vlaneseq
    %v349 = vshrl.u32 %v348, 7
    %v350 = vsub.s32 0, %v349
    %v351 = vrot.slane %v128, %v350
    %v352 = vlaneseq
    %v353 = vshrl.u32 %v352, 7
    %v354 = vsub.s32 0, %v353
    %v355 = vrot.slane %v129, %v354
    %v358 = vcombine.low %v351, %v355
    %v360 = vunpack.c.l.s4 1983009808
    %v361 = vunpack.c.0.s8 %v360
    %v362 = vlaneseq
    %v363 = vshrl.u32 %v362, 7
    %v364 = vsub.s32 %v361, %v363
    %v365 = vrot.slane %v358, %v364
    %v367 = vmul.f32 %v347, %v365
    %v368 = vadd.f32 %v367, 0.0
    %v369 = vstv %s131
    %v370 = vmul.f32 %v369, %v126
    %v371 = vadd.f32 %v370, 0.0
    %v372 = vstv %s180
    %v373 = vmul.f32 %v372, %v127
    %v374 = vadd.f32 %v371, %v373
    %v375 = vstv %s138
    %v376 = vmul.f32 %v375, %v126
    %378 = vrot.lane.b32.xlu0 %v376, 112
    %v379 = vpop.permute.xlu0 %378
    %v380 = vrot.slane %v379, 2
    %v381 = vsel %vm240, %v379, %v380
    %v383 = vadd.f32 %v374, %v381
    %v384 = vstv %s187
    %v385 = vmul.f32 %v384, %v127
    %387 = vrot.lane.b32.xlu0 %v385, 112
    %v388 = vpop.permute.xlu0 %387
    %v389 = vrot.slane %v388, 2
    %v390 = vsel %vm240, %v388, %v389
    %v392 = vadd.f32 %v383, %v390
    %v393 = vstv %s145
    %v394 = vmul.f32 %v393, %v126
    %396 = vrot.lane.b32.xlu0 %v394, 96
    %v397 = vpop.permute.xlu0 %396
    %v398 = vrot.slane %v397, 2
    %v399 = vsel %vm259, %v397, %v398
    %v401 = vadd.f32 %v392, %v399
    %v402 = vstv %s194
    %v403 = vmul.f32 %v402, %v127
    %405 = vrot.lane.b32.xlu0 %v403, 96
    %v406 = vpop.permute.xlu0 %405
    %v407 = vrot.slane %v406, 2
    %v408 = vsel %vm259, %v406, %v407
    %v410 = vadd.f32 %v401, %v408
    %v411 = vstv %s152
    %v412 = vmul.f32 %v411, %v126
    %414 = vrot.lane.b32.xlu0 %v412, 80
    %v415 = vpop.permute.xlu0 %414
    %v416 = vrot.slane %v415, 2
    %v417 = vsel %vm278, %v415, %v416
    %v419 = vadd.f32 %v410, %v417
    %v420 = vstv %s201
    %v421 = vmul.f32 %v420, %v127
    %423 = vrot.lane.b32.xlu0 %v421, 80
    %v424 = vpop.permute.xlu0 %423
    %v425 = vrot.slane %v424, 2
    %v426 = vsel %vm278, %v424, %v425
    %v428 = vadd.f32 %v419, %v426
    %v429 = vstv %s159
    %v430 = vmul.f32 %v429, %v126
    %432 = vrot.lane.b32.xlu0 %v430, 64
    %v433 = vpop.permute.xlu0 %432
    %v434 = vrot.slane %v433, 2
    %v435 = vsel %vm297, %v433, %v434
    %v437 = vadd.f32 %v428, %v435
    %v438 = vstv %s208
    %v439 = vmul.f32 %v438, %v127
    %441 = vrot.lane.b32.xlu0 %v439, 64
    %v442 = vpop.permute.xlu0 %441
    %v443 = vrot.slane %v442, 2
    %v444 = vsel %vm297, %v442, %v443
    %v446 = vadd.f32 %v437, %v444
    %v447 = vstv %s166
    %v448 = vmul.f32 %v447, %v126
    %450 = vrot.lane.b32.xlu0 %v448, 48
    %v451 = vpop.permute.xlu0 %450
    %v452 = vrot.slane %v451, 2
    %v453 = vsel %vm316, %v451, %v452
    %v455 = vadd.f32 %v446, %v453
    %v456 = vstv %s215
    %v457 = vmul.f32 %v456, %v127
    %459 = vrot.lane.b32.xlu0 %v457, 48
    %v460 = vpop.permute.xlu0 %459
    %v461 = vrot.slane %v460, 2
    %v462 = vsel %vm316, %v460, %v461
    %v464 = vadd.f32 %v455, %v462
    %v465 = vstv %s173
    %v466 = vmul.f32 %v465, %v126
    %468 = vrot.lane.b32.xlu0 %v466, 32
    %v469 = vpop.permute.xlu0 %468
    %v470 = vrot.slane %v469, 2
    %v471 = vsel %vm335, %v469, %v470
    %v473 = vadd.f32 %v464, %v471
    %v474 = vstv %s222
    %v475 = vmul.f32 %v474, %v127
    %477 = vrot.lane.b32.xlu0 %v475, 32
    %v478 = vpop.permute.xlu0 %477
    %v479 = vrot.slane %v478, 2
    %v480 = vsel %vm335, %v478, %v479
    %v482 = vadd.f32 %v473, %v480
    %v483 = vlaneseq
    %v484 = vshrl.u32 %v483, 7
    %v485 = vsub.s32 1, %v484
    %v486 = vrot.slane %v128, %v485
    %v487 = vlaneseq
    %v488 = vshrl.u32 %v487, 7
    %v489 = vsub.s32 1, %v488
    %v490 = vrot.slane %v129, %v489
    %v493 = vcombine.low %v486, %v490
    %v495 = vunpack.c.l.s4 1983009808
    %v496 = vunpack.c.0.s8 %v495
    %v497 = vlaneseq
    %v498 = vshrl.u32 %v497, 7
    %v499 = vsub.s32 %v496, %v498
    %v500 = vrot.slane %v493, %v499
    %501 = vrot.lane.b32.xlu0 %v500, 1
    %v502 = vpop.permute.xlu0 %501
    %v503 = vrot.slane %v502, 6
    %vm504 = vcmask 7168
    %v505 = vsel %vm504, %v503, %v502
    %v507 = vmul.f32 %v482, %v505
    %509 = vrot.lane.b32.xlu0 %v507, 127
    %v510 = vpop.permute.xlu0 %509
    %v511 = vrot.slane %v510, 2
    %vm512 = vcmask 1039360
    %v513 = vsel %vm512, %v510, %v511
    %v515 = vadd.f32 %v368, %v513
    %v516 = vstv %s132
    %v517 = vmul.f32 %v516, %v126
    %v518 = vadd.f32 %v517, 0.0
    %v519 = vstv %s181
    %v520 = vmul.f32 %v519, %v127
    %v521 = vadd.f32 %v518, %v520
    %v522 = vstv %s139
    %v523 = vmul.f32 %v522, %v126
    %525 = vrot.lane.b32.xlu0 %v523, 112
    %v526 = vpop.permute.xlu0 %525
    %v527 = vrot.slane %v526, 2
    %v528 = vsel %vm240, %v526, %v527
    %v530 = vadd.f32 %v521, %v528
    %v531 = vstv %s188
    %v532 = vmul.f32 %v531, %v127
    %534 = vrot.lane.b32.xlu0 %v532, 112
    %v535 = vpop.permute.xlu0 %534
    %v536 = vrot.slane %v535, 2
    %v537 = vsel %vm240, %v535, %v536
    %v539 = vadd.f32 %v530, %v537
    %v540 = vstv %s146
    %v541 = vmul.f32 %v540, %v126
    %543 = vrot.lane.b32.xlu0 %v541, 96
    %v544 = vpop.permute.xlu0 %543
    %v545 = vrot.slane %v544, 2
    %v546 = vsel %vm259, %v544, %v545
    %v548 = vadd.f32 %v539, %v546
    %v549 = vstv %s195
    %v550 = vmul.f32 %v549, %v127
    %552 = vrot.lane.b32.xlu0 %v550, 96
    %v553 = vpop.permute.xlu0 %552
    %v554 = vrot.slane %v553, 2
    %v555 = vsel %vm259, %v553, %v554
    %v557 = vadd.f32 %v548, %v555
    %v558 = vstv %s153
    %v559 = vmul.f32 %v558, %v126
    %561 = vrot.lane.b32.xlu0 %v559, 80
    %v562 = vpop.permute.xlu0 %561
    %v563 = vrot.slane %v562, 2
    %v564 = vsel %vm278, %v562, %v563
    %v566 = vadd.f32 %v557, %v564
    %v567 = vstv %s202
    %v568 = vmul.f32 %v567, %v127
    %570 = vrot.lane.b32.xlu0 %v568, 80
    %v571 = vpop.permute.xlu0 %570
    %v572 = vrot.slane %v571, 2
    %v573 = vsel %vm278, %v571, %v572
    %v575 = vadd.f32 %v566, %v573
    %v576 = vstv %s160
    %v577 = vmul.f32 %v576, %v126
    %579 = vrot.lane.b32.xlu0 %v577, 64
    %v580 = vpop.permute.xlu0 %579
    %v581 = vrot.slane %v580, 2
    %v582 = vsel %vm297, %v580, %v581
    %v584 = vadd.f32 %v575, %v582
    %v585 = vstv %s209
    %v586 = vmul.f32 %v585, %v127
    %588 = vrot.lane.b32.xlu0 %v586, 64
    %v589 = vpop.permute.xlu0 %588
    %v590 = vrot.slane %v589, 2
    %v591 = vsel %vm297, %v589, %v590
    %v593 = vadd.f32 %v584, %v591
    %v594 = vstv %s167
    %v595 = vmul.f32 %v594, %v126
    %597 = vrot.lane.b32.xlu0 %v595, 48
    %v598 = vpop.permute.xlu0 %597
    %v599 = vrot.slane %v598, 2
    %v600 = vsel %vm316, %v598, %v599
    %v602 = vadd.f32 %v593, %v600
    %v603 = vstv %s216
    %v604 = vmul.f32 %v603, %v127
    %606 = vrot.lane.b32.xlu0 %v604, 48
    %v607 = vpop.permute.xlu0 %606
    %v608 = vrot.slane %v607, 2
    %v609 = vsel %vm316, %v607, %v608
    %v611 = vadd.f32 %v602, %v609
    %v612 = vstv %s174
    %v613 = vmul.f32 %v612, %v126
    %615 = vrot.lane.b32.xlu0 %v613, 32
    %v616 = vpop.permute.xlu0 %615
    %v617 = vrot.slane %v616, 2
    %v618 = vsel %vm335, %v616, %v617
    %v620 = vadd.f32 %v611, %v618
    %v621 = vstv %s223
    %v622 = vmul.f32 %v621, %v127
    %624 = vrot.lane.b32.xlu0 %v622, 32
    %v625 = vpop.permute.xlu0 %624
    %v626 = vrot.slane %v625, 2
    %v627 = vsel %vm335, %v625, %v626
    %v629 = vadd.f32 %v620, %v627
    %v630 = vlaneseq
    %v631 = vshrl.u32 %v630, 7
    %v632 = vsub.s32 2, %v631
    %v633 = vrot.slane %v128, %v632
    %v634 = vlaneseq
    %v635 = vshrl.u32 %v634, 7
    %v636 = vsub.s32 2, %v635
    %v637 = vrot.slane %v129, %v636
    %v640 = vcombine.low %v633, %v637
    %v642 = vunpack.c.l.s4 1983009808
    %v643 = vunpack.c.0.s8 %v642
    %v644 = vlaneseq
    %v645 = vshrl.u32 %v644, 7
    %v646 = vsub.s32 %v643, %v645
    %v647 = vrot.slane %v640, %v646
    %648 = vrot.lane.b32.xlu0 %v647, 2
    %v649 = vpop.permute.xlu0 %648
    %v650 = vrot.slane %v649, 6
    %vm651 = vcmask 15360
    %v652 = vsel %vm651, %v650, %v649
    %v654 = vmul.f32 %v629, %v652
    %656 = vrot.lane.b32.xlu0 %v654, 126
    %v657 = vpop.permute.xlu0 %656
    %v658 = vrot.slane %v657, 2
    %vm659 = vcmask 1031168
    %v660 = vsel %vm659, %v657, %v658
    %v662 = vadd.f32 %v515, %v660
    %v663 = vstv %s133
    %v664 = vmul.f32 %v663, %v126
    %v665 = vadd.f32 %v664, 0.0
    %v666 = vstv %s182
    %v667 = vmul.f32 %v666, %v127
    %v668 = vadd.f32 %v665, %v667
    %v669 = vstv %s140
    %v670 = vmul.f32 %v669, %v126
    %672 = vrot.lane.b32.xlu0 %v670, 112
    %v673 = vpop.permute.xlu0 %672
    %v674 = vrot.slane %v673, 2
    %v675 = vsel %vm240, %v673, %v674
    %v677 = vadd.f32 %v668, %v675
    %v678 = vstv %s189
    %v679 = vmul.f32 %v678, %v127
    %681 = vrot.lane.b32.xlu0 %v679, 112
    %v682 = vpop.permute.xlu0 %681
    %v683 = vrot.slane %v682, 2
    %v684 = vsel %vm240, %v682, %v683
    %v686 = vadd.f32 %v677, %v684
    %v687 = vstv %s147
    %v688 = vmul.f32 %v687, %v126
    %690 = vrot.lane.b32.xlu0 %v688, 96
    %v691 = vpop.permute.xlu0 %690
    %v692 = vrot.slane %v691, 2
    %v693 = vsel %vm259, %v691, %v692
    %v695 = vadd.f32 %v686, %v693
    %v696 = vstv %s196
    %v697 = vmul.f32 %v696, %v127
    %699 = vrot.lane.b32.xlu0 %v697, 96
    %v700 = vpop.permute.xlu0 %699
    %v701 = vrot.slane %v700, 2
    %v702 = vsel %vm259, %v700, %v701
    %v704 = vadd.f32 %v695, %v702
    %v705 = vstv %s154
    %v706 = vmul.f32 %v705, %v126
    %708 = vrot.lane.b32.xlu0 %v706, 80
    %v709 = vpop.permute.xlu0 %708
    %v710 = vrot.slane %v709, 2
    %v711 = vsel %vm278, %v709, %v710
    %v713 = vadd.f32 %v704, %v711
    %v714 = vstv %s203
    %v715 = vmul.f32 %v714, %v127
    %717 = vrot.lane.b32.xlu0 %v715, 80
    %v718 = vpop.permute.xlu0 %717
    %v719 = vrot.slane %v718, 2
    %v720 = vsel %vm278, %v718, %v719
    %v722 = vadd.f32 %v713, %v720
    %v723 = vstv %s161
    %v724 = vmul.f32 %v723, %v126
    %726 = vrot.lane.b32.xlu0 %v724, 64
    %v727 = vpop.permute.xlu0 %726
    %v728 = vrot.slane %v727, 2
    %v729 = vsel %vm297, %v727, %v728
    %v731 = vadd.f32 %v722, %v729
    %v732 = vstv %s210
    %v733 = vmul.f32 %v732, %v127
    %735 = vrot.lane.b32.xlu0 %v733, 64
    %v736 = vpop.permute.xlu0 %735
    %v737 = vrot.slane %v736, 2
    %v738 = vsel %vm297, %v736, %v737
    %v740 = vadd.f32 %v731, %v738
    %v741 = vstv %s168
    %v742 = vmul.f32 %v741, %v126
    %744 = vrot.lane.b32.xlu0 %v742, 48
    %v745 = vpop.permute.xlu0 %744
    %v746 = vrot.slane %v745, 2
    %v747 = vsel %vm316, %v745, %v746
    %v749 = vadd.f32 %v740, %v747
    %v750 = vstv %s217
    %v751 = vmul.f32 %v750, %v127
    %753 = vrot.lane.b32.xlu0 %v751, 48
    %v754 = vpop.permute.xlu0 %753
    %v755 = vrot.slane %v754, 2
    %v756 = vsel %vm316, %v754, %v755
    %v758 = vadd.f32 %v749, %v756
    %v759 = vstv %s175
    %v760 = vmul.f32 %v759, %v126
    %762 = vrot.lane.b32.xlu0 %v760, 32
    %v763 = vpop.permute.xlu0 %762
    %v764 = vrot.slane %v763, 2
    %v765 = vsel %vm335, %v763, %v764
    %v767 = vadd.f32 %v758, %v765
    %v768 = vstv %s224
    %v769 = vmul.f32 %v768, %v127
    %771 = vrot.lane.b32.xlu0 %v769, 32
    %v772 = vpop.permute.xlu0 %771
    %v773 = vrot.slane %v772, 2
    %v774 = vsel %vm335, %v772, %v773
    %v776 = vadd.f32 %v767, %v774
    %v777 = vlaneseq
    %v778 = vshrl.u32 %v777, 7
    %v779 = vsub.s32 3, %v778
    %v780 = vrot.slane %v128, %v779
    %v781 = vlaneseq
    %v782 = vshrl.u32 %v781, 7
    %v783 = vsub.s32 3, %v782
    %v784 = vrot.slane %v129, %v783
    %v787 = vcombine.low %v780, %v784
    %v789 = vunpack.c.l.s4 1983009808
    %v790 = vunpack.c.0.s8 %v789
    %v791 = vlaneseq
    %v792 = vshrl.u32 %v791, 7
    %v793 = vsub.s32 %v790, %v792
    %v794 = vrot.slane %v787, %v793
    %795 = vrot.lane.b32.xlu0 %v794, 3
    %v796 = vpop.permute.xlu0 %795
    %v797 = vrot.slane %v796, 6
    %vm798 = vcmask 23552
    %v799 = vsel %vm798, %v797, %v796
    %v801 = vmul.f32 %v776, %v799
    %803 = vrot.lane.b32.xlu0 %v801, 125
    %v804 = vpop.permute.xlu0 %803
    %v805 = vrot.slane %v804, 2
    %vm806 = vcmask 1022976
    %v807 = vsel %vm806, %v804, %v805
    %v809 = vadd.f32 %v662, %v807
    %v810 = vstv %s134
    %v811 = vmul.f32 %v810, %v126
    %v812 = vadd.f32 %v811, 0.0
    %v813 = vstv %s183
    %v814 = vmul.f32 %v813, %v127
    %v815 = vadd.f32 %v812, %v814
    %v816 = vstv %s141
    %v817 = vmul.f32 %v816, %v126
    %819 = vrot.lane.b32.xlu0 %v817, 112
    %v820 = vpop.permute.xlu0 %819
    %v821 = vrot.slane %v820, 2
    %v822 = vsel %vm240, %v820, %v821
    %v824 = vadd.f32 %v815, %v822
    %v825 = vstv %s190
    %v826 = vmul.f32 %v825, %v127
    %828 = vrot.lane.b32.xlu0 %v826, 112
    %v829 = vpop.permute.xlu0 %828
    %v830 = vrot.slane %v829, 2
    %v831 = vsel %vm240, %v829, %v830
    %v833 = vadd.f32 %v824, %v831
    %v834 = vstv %s148
    %v835 = vmul.f32 %v834, %v126
    %837 = vrot.lane.b32.xlu0 %v835, 96
    %v838 = vpop.permute.xlu0 %837
    %v839 = vrot.slane %v838, 2
    %v840 = vsel %vm259, %v838, %v839
    %v842 = vadd.f32 %v833, %v840
    %v843 = vstv %s197
    %v844 = vmul.f32 %v843, %v127
    %846 = vrot.lane.b32.xlu0 %v844, 96
    %v847 = vpop.permute.xlu0 %846
    %v848 = vrot.slane %v847, 2
    %v849 = vsel %vm259, %v847, %v848
    %v851 = vadd.f32 %v842, %v849
    %v852 = vstv %s155
    %v853 = vmul.f32 %v852, %v126
    %855 = vrot.lane.b32.xlu0 %v853, 80
    %v856 = vpop.permute.xlu0 %855
    %v857 = vrot.slane %v856, 2
    %v858 = vsel %vm278, %v856, %v857
    %v860 = vadd.f32 %v851, %v858
    %v861 = vstv %s204
    %v862 = vmul.f32 %v861, %v127
    %864 = vrot.lane.b32.xlu0 %v862, 80
    %v865 = vpop.permute.xlu0 %864
    %v866 = vrot.slane %v865, 2
    %v867 = vsel %vm278, %v865, %v866
    %v869 = vadd.f32 %v860, %v867
    %v870 = vstv %s162
    %v871 = vmul.f32 %v870, %v126
    %873 = vrot.lane.b32.xlu0 %v871, 64
    %v874 = vpop.permute.xlu0 %873
    %v875 = vrot.slane %v874, 2
    %v876 = vsel %vm297, %v874, %v875
    %v878 = vadd.f32 %v869, %v876
    %v879 = vstv %s211
    %v880 = vmul.f32 %v879, %v127
    %882 = vrot.lane.b32.xlu0 %v880, 64
    %v883 = vpop.permute.xlu0 %882
    %v884 = vrot.slane %v883, 2
    %v885 = vsel %vm297, %v883, %v884
    %v887 = vadd.f32 %v878, %v885
    %v888 = vstv %s169
    %v889 = vmul.f32 %v888, %v126
    %891 = vrot.lane.b32.xlu0 %v889, 48
    %v892 = vpop.permute.xlu0 %891
    %v893 = vrot.slane %v892, 2
    %v894 = vsel %vm316, %v892, %v893
    %v896 = vadd.f32 %v887, %v894
    %v897 = vstv %s218
    %v898 = vmul.f32 %v897, %v127
    %900 = vrot.lane.b32.xlu0 %v898, 48
    %v901 = vpop.permute.xlu0 %900
    %v902 = vrot.slane %v901, 2
    %v903 = vsel %vm316, %v901, %v902
    %v905 = vadd.f32 %v896, %v903
    %v906 = vstv %s176
    %v907 = vmul.f32 %v906, %v126
    %909 = vrot.lane.b32.xlu0 %v907, 32
    %v910 = vpop.permute.xlu0 %909
    %v911 = vrot.slane %v910, 2
    %v912 = vsel %vm335, %v910, %v911
    %v914 = vadd.f32 %v905, %v912
    %v915 = vstv %s225
    %v916 = vmul.f32 %v915, %v127
    %918 = vrot.lane.b32.xlu0 %v916, 32
    %v919 = vpop.permute.xlu0 %918
    %v920 = vrot.slane %v919, 2
    %v921 = vsel %vm335, %v919, %v920
    %v923 = vadd.f32 %v914, %v921
    %v924 = vlaneseq
    %v925 = vshrl.u32 %v924, 7
    %v926 = vsub.s32 4, %v925
    %v927 = vrot.slane %v128, %v926
    %v928 = vlaneseq
    %v929 = vshrl.u32 %v928, 7
    %v930 = vsub.s32 4, %v929
    %v931 = vrot.slane %v129, %v930
    %v934 = vcombine.low %v927, %v931
    %v936 = vunpack.c.l.s4 1983009808
    %v937 = vunpack.c.0.s8 %v936
    %v938 = vlaneseq
    %v939 = vshrl.u32 %v938, 7
    %v940 = vsub.s32 %v937, %v939
    %v941 = vrot.slane %v934, %v940
    %942 = vrot.lane.b32.xlu0 %v941, 4
    %v943 = vpop.permute.xlu0 %942
    %v944 = vrot.slane %v943, 6
    %vm945 = vcmask 31744
    %v946 = vsel %vm945, %v944, %v943
    %v948 = vmul.f32 %v923, %v946
    %950 = vrot.lane.b32.xlu0 %v948, 124
    %v951 = vpop.permute.xlu0 %950
    %v952 = vrot.slane %v951, 2
    %vm953 = vcmask 1014784
    %v954 = vsel %vm953, %v951, %v952
    %v956 = vadd.f32 %v809, %v954
    %v957 = vstv %s135
    %v958 = vmul.f32 %v957, %v126
    %v959 = vadd.f32 %v958, 0.0
    %v960 = vstv %s184
    %v961 = vmul.f32 %v960, %v127
    %v962 = vadd.f32 %v959, %v961
    %v963 = vstv %s142
    %v964 = vmul.f32 %v963, %v126
    %966 = vrot.lane.b32.xlu0 %v964, 112
    %v967 = vpop.permute.xlu0 %966
    %v968 = vrot.slane %v967, 2
    %v969 = vsel %vm240, %v967, %v968
    %v971 = vadd.f32 %v962, %v969
    %v972 = vstv %s191
    %v973 = vmul.f32 %v972, %v127
    %975 = vrot.lane.b32.xlu0 %v973, 112
    %v976 = vpop.permute.xlu0 %975
    %v977 = vrot.slane %v976, 2
    %v978 = vsel %vm240, %v976, %v977
    %v980 = vadd.f32 %v971, %v978
    %v981 = vstv %s149
    %v982 = vmul.f32 %v981, %v126
    %984 = vrot.lane.b32.xlu0 %v982, 96
    %v985 = vpop.permute.xlu0 %984
    %v986 = vrot.slane %v985, 2
    %v987 = vsel %vm259, %v985, %v986
    %v989 = vadd.f32 %v980, %v987
    %v990 = vstv %s198
    %v991 = vmul.f32 %v990, %v127
    %993 = vrot.lane.b32.xlu0 %v991, 96
    %v994 = vpop.permute.xlu0 %993
    %v995 = vrot.slane %v994, 2
    %v996 = vsel %vm259, %v994, %v995
    %v998 = vadd.f32 %v989, %v996
    %v999 = vstv %s156
    %v1000 = vmul.f32 %v999, %v126
    %1002 = vrot.lane.b32.xlu0 %v1000, 80
    %v1003 = vpop.permute.xlu0 %1002
    %v1004 = vrot.slane %v1003, 2
    %v1005 = vsel %vm278, %v1003, %v1004
    %v1007 = vadd.f32 %v998, %v1005
    %v1008 = vstv %s205
    %v1009 = vmul.f32 %v1008, %v127
    %1011 = vrot.lane.b32.xlu0 %v1009, 80
    %v1012 = vpop.permute.xlu0 %1011
    %v1013 = vrot.slane %v1012, 2
    %v1014 = vsel %vm278, %v1012, %v1013
    %v1016 = vadd.f32 %v1007, %v1014
    %v1017 = vstv %s163
    %v1018 = vmul.f32 %v1017, %v126
    %1020 = vrot.lane.b32.xlu0 %v1018, 64
    %v1021 = vpop.permute.xlu0 %1020
    %v1022 = vrot.slane %v1021, 2
    %v1023 = vsel %vm297, %v1021, %v1022
    %v1025 = vadd.f32 %v1016, %v1023
    %v1026 = vstv %s212
    %v1027 = vmul.f32 %v1026, %v127
    %1029 = vrot.lane.b32.xlu0 %v1027, 64
    %v1030 = vpop.permute.xlu0 %1029
    %v1031 = vrot.slane %v1030, 2
    %v1032 = vsel %vm297, %v1030, %v1031
    %v1034 = vadd.f32 %v1025, %v1032
    %v1035 = vstv %s170
    %v1036 = vmul.f32 %v1035, %v126
    %1038 = vrot.lane.b32.xlu0 %v1036, 48
    %v1039 = vpop.permute.xlu0 %1038
    %v1040 = vrot.slane %v1039, 2
    %v1041 = vsel %vm316, %v1039, %v1040
    %v1043 = vadd.f32 %v1034, %v1041
    %v1044 = vstv %s219
    %v1045 = vmul.f32 %v1044, %v127
    %1047 = vrot.lane.b32.xlu0 %v1045, 48
    %v1048 = vpop.permute.xlu0 %1047
    %v1049 = vrot.slane %v1048, 2
    %v1050 = vsel %vm316, %v1048, %v1049
    %v1052 = vadd.f32 %v1043, %v1050
    %v1053 = vstv %s177
    %v1054 = vmul.f32 %v1053, %v126
    %1056 = vrot.lane.b32.xlu0 %v1054, 32
    %v1057 = vpop.permute.xlu0 %1056
    %v1058 = vrot.slane %v1057, 2
    %v1059 = vsel %vm335, %v1057, %v1058
    %v1061 = vadd.f32 %v1052, %v1059
    %v1062 = vstv %s226
    %v1063 = vmul.f32 %v1062, %v127
    %1065 = vrot.lane.b32.xlu0 %v1063, 32
    %v1066 = vpop.permute.xlu0 %1065
    %v1067 = vrot.slane %v1066, 2
    %v1068 = vsel %vm335, %v1066, %v1067
    %v1070 = vadd.f32 %v1061, %v1068
    %v1071 = vlaneseq
    %v1072 = vshrl.u32 %v1071, 7
    %v1073 = vsub.s32 5, %v1072
    %v1074 = vrot.slane %v128, %v1073
    %v1075 = vlaneseq
    %v1076 = vshrl.u32 %v1075, 7
    %v1077 = vsub.s32 5, %v1076
    %v1078 = vrot.slane %v129, %v1077
    %v1081 = vcombine.low %v1074, %v1078
    %v1083 = vunpack.c.l.s4 1983009808
    %v1084 = vunpack.c.0.s8 %v1083
    %v1085 = vlaneseq
    %v1086 = vshrl.u32 %v1085, 7
    %v1087 = vsub.s32 %v1084, %v1086
    %v1088 = vrot.slane %v1081, %v1087
    %1089 = vrot.lane.b32.xlu0 %v1088, 5
    %v1090 = vpop.permute.xlu0 %1089
    %v1091 = vrot.slane %v1090, 6
    %vm1092 = vcmask 39936
    %v1093 = vsel %vm1092, %v1091, %v1090
    %v1095 = vmul.f32 %v1070, %v1093
    %1097 = vrot.lane.b32.xlu0 %v1095, 123
    %v1098 = vpop.permute.xlu0 %1097
    %v1099 = vrot.slane %v1098, 2
    %vm1100 = vcmask 1006592
    %v1101 = vsel %vm1100, %v1098, %v1099
    %v1103 = vadd.f32 %v956, %v1101
    %v1104 = vstv %s136
    %v1105 = vmul.f32 %v1104, %v126
    %v1106 = vadd.f32 %v1105, 0.0
    %v1107 = vstv %s185
    %v1108 = vmul.f32 %v1107, %v127
    %v1109 = vadd.f32 %v1106, %v1108
    %v1110 = vstv %s143
    %v1111 = vmul.f32 %v1110, %v126
    %1113 = vrot.lane.b32.xlu0 %v1111, 112
    %v1114 = vpop.permute.xlu0 %1113
    %v1115 = vrot.slane %v1114, 2
    %v1116 = vsel %vm240, %v1114, %v1115
    %v1118 = vadd.f32 %v1109, %v1116
    %v1119 = vstv %s192
    %v1120 = vmul.f32 %v1119, %v127
    %1122 = vrot.lane.b32.xlu0 %v1120, 112
    %v1123 = vpop.permute.xlu0 %1122
    %v1124 = vrot.slane %v1123, 2
    %v1125 = vsel %vm240, %v1123, %v1124
    %v1127 = vadd.f32 %v1118, %v1125
    %v1128 = vstv %s150
    %v1129 = vmul.f32 %v1128, %v126
    %1131 = vrot.lane.b32.xlu0 %v1129, 96
    %v1132 = vpop.permute.xlu0 %1131
    %v1133 = vrot.slane %v1132, 2
    %v1134 = vsel %vm259, %v1132, %v1133
    %v1136 = vadd.f32 %v1127, %v1134
    %v1137 = vstv %s199
    %v1138 = vmul.f32 %v1137, %v127
    %1140 = vrot.lane.b32.xlu0 %v1138, 96
    %v1141 = vpop.permute.xlu0 %1140
    %v1142 = vrot.slane %v1141, 2
    %v1143 = vsel %vm259, %v1141, %v1142
    %v1145 = vadd.f32 %v1136, %v1143
    %v1146 = vstv %s157
    %v1147 = vmul.f32 %v1146, %v126
    %1149 = vrot.lane.b32.xlu0 %v1147, 80
    %v1150 = vpop.permute.xlu0 %1149
    %v1151 = vrot.slane %v1150, 2
    %v1152 = vsel %vm278, %v1150, %v1151
    %v1154 = vadd.f32 %v1145, %v1152
    %v1155 = vstv %s206
    %v1156 = vmul.f32 %v1155, %v127
    %1158 = vrot.lane.b32.xlu0 %v1156, 80
    %v1159 = vpop.permute.xlu0 %1158
    %v1160 = vrot.slane %v1159, 2
    %v1161 = vsel %vm278, %v1159, %v1160
    %v1163 = vadd.f32 %v1154, %v1161
    %v1164 = vstv %s164
    %v1165 = vmul.f32 %v1164, %v126
    %1167 = vrot.lane.b32.xlu0 %v1165, 64
    %v1168 = vpop.permute.xlu0 %1167
    %v1169 = vrot.slane %v1168, 2
    %v1170 = vsel %vm297, %v1168, %v1169
    %v1172 = vadd.f32 %v1163, %v1170
    %v1173 = vstv %s213
    %v1174 = vmul.f32 %v1173, %v127
    %1176 = vrot.lane.b32.xlu0 %v1174, 64
    %v1177 = vpop.permute.xlu0 %1176
    %v1178 = vrot.slane %v1177, 2
    %v1179 = vsel %vm297, %v1177, %v1178
    %v1181 = vadd.f32 %v1172, %v1179
    %v1182 = vstv %s171
    %v1183 = vmul.f32 %v1182, %v126
    %1185 = vrot.lane.b32.xlu0 %v1183, 48
    %v1186 = vpop.permute.xlu0 %1185
    %v1187 = vrot.slane %v1186, 2
    %v1188 = vsel %vm316, %v1186, %v1187
    %v1190 = vadd.f32 %v1181, %v1188
    %v1191 = vstv %s220
    %v1192 = vmul.f32 %v1191, %v127
    %1194 = vrot.lane.b32.xlu0 %v1192, 48
    %v1195 = vpop.permute.xlu0 %1194
    %v1196 = vrot.slane %v1195, 2
    %v1197 = vsel %vm316, %v1195, %v1196
    %v1199 = vadd.f32 %v1190, %v1197
    %v1200 = vstv %s178
    %v1201 = vmul.f32 %v1200, %v126
    %1203 = vrot.lane.b32.xlu0 %v1201, 32
    %v1204 = vpop.permute.xlu0 %1203
    %v1205 = vrot.slane %v1204, 2
    %v1206 = vsel %vm335, %v1204, %v1205
    %v1208 = vadd.f32 %v1199, %v1206
    %v1209 = vstv %s227
    %v1210 = vmul.f32 %v1209, %v127
    %1212 = vrot.lane.b32.xlu0 %v1210, 32
    %v1213 = vpop.permute.xlu0 %1212
    %v1214 = vrot.slane %v1213, 2
    %v1215 = vsel %vm335, %v1213, %v1214
    %v1217 = vadd.f32 %v1208, %v1215
    %v1218 = vlaneseq
    %v1219 = vshrl.u32 %v1218, 7
    %v1220 = vsub.s32 6, %v1219
    %v1221 = vrot.slane %v128, %v1220
    %v1222 = vlaneseq
    %v1223 = vshrl.u32 %v1222, 7
    %v1224 = vsub.s32 6, %v1223
    %v1225 = vrot.slane %v129, %v1224
    %v1228 = vcombine.low %v1221, %v1225
    %v1230 = vunpack.c.l.s4 1983009808
    %v1231 = vunpack.c.0.s8 %v1230
    %v1232 = vlaneseq
    %v1233 = vshrl.u32 %v1232, 7
    %v1234 = vsub.s32 %v1231, %v1233
    %v1235 = vrot.slane %v1228, %v1234
    %1236 = vrot.lane.b32.xlu0 %v1235, 6
    %v1237 = vpop.permute.xlu0 %1236
    %v1238 = vrot.slane %v1237, 6
    %vm1239 = vcmask 48128
    %v1240 = vsel %vm1239, %v1238, %v1237
    %v1242 = vmul.f32 %v1217, %v1240
    %1244 = vrot.lane.b32.xlu0 %v1242, 122
    %v1245 = vpop.permute.xlu0 %1244
    %v1246 = vrot.slane %v1245, 2
    %vm1247 = vcmask 998400
    %v1248 = vsel %vm1247, %v1245, %v1246
    %v1250 = vadd.f32 %v1103, %v1248
    %v1251 = vxor.u32 %v1250, 2147483648
    %v1252 = vmul.f32 %v1251, 1.442695
    %v1253 = vpow.pop %v1252
    %v1254 = vadd.f32 %v1253, 1.0
    %v1255 = vrcp.pop %v1254
    %v1256 = vmul.f32 1.0, %v1255
    %1257 = vst [vmem:[#allocation10] sm:$0xf] %v1256
    // Predicated region
    $region26: #{tpu_custom_call.1} parent=1 // pred_check
      _
    $region27: #{tpu_custom_call.1} parent=1 // pred_check_branch
      %1259 = sbr.rel (0) target = $region29
    $region28: #{tpu_custom_call.1} parent=1 // pred_region
      %s1261 = ssub.s32 64, 64
      %1262 = vsyncadd [#allocation5], %s1261
      %s1264 = sshll.u32 [#allocation10], 4
      %s1265 = int_to_ptr.vmem [resolvable:$true] %s1264
      %1267 = dma.vmem_to_hbm [thread:$0]  %s1265, 64, %s3, [#allocation5]
    $region29: #{tpu_custom_call.1} parent=1 // pred_fallthru
      _
    // Predicated region
    $region30: #{tpu_custom_call.1} parent=1 // pred_check
      _
    $region31: #{tpu_custom_call.1} parent=1 // pred_check_branch
      %1269 = sbr.rel (0) target = $region33
    $region32: #{tpu_custom_call.1} parent=1 // pred_region
      %1270 = dma.done [#allocation5], 64
    $region33: #{tpu_custom_call.1} parent=1 // pred_fallthru
      _
    %1271 = vsyncpa [#allocation4], 1
    %1272 = vsyncpa [#allocation9], 1
    %1273 = vsyncpa [#allocation5], 1
    %1274 = vsyncpa [#allocation6], 1

</llo_original>
